<compile_context>
chip_gen: v6e
topology: v6e:2x2x1
jax: 0.10.0
libtpu: 0.0.40
codegen_flags: <defaults>
</compile_context>

<pallas_src>
import functools

import jax
import jax.numpy as jnp
import numpy as np
from jax import lax
from jax.experimental import pallas as pl
from jax.experimental.pallas import tpu as pltpu

SEQ_LEN = 100  # fixed by the module's `for n in range(100)` loop
UNROLL = 4     # SEQ_LEN % UNROLL == 0


def lstm_decoder_kernel(latent_ref, fc1w_ref, fc1b_ref,
                        wih0_ref, b0_ref,
                        wpack1_ref, b1_ref,
                        wpack2_ref, fc2b_ref,
                        out_ref):
    B = latent_ref.shape[0]
    H = fc1w_ref.shape[1]
    O = wih0_ref.shape[0]
    G = 4 * H

    # ---- hoisted loop-invariant loads (weights resident across all steps) ----
    w_ih0 = wih0_ref[...]                                   # (O, 4H)
    w_pk1 = wpack1_ref[...]                                 # (H, 8H)   = [W_ih1 | W_hh0]
    w_pk2 = wpack2_ref[...]                                 # (H, 4H+O) = [W_hh1 | W_fc2]
    b0 = jnp.broadcast_to(b0_ref[...], (B, G))              # pre-broadcast biases
    b1 = jnp.broadcast_to(b1_ref[...], (B, G))
    b_fc2 = jnp.broadcast_to(fc2b_ref[...], (B, O))

    # ---- initial state, kept as fori_loop carries (vregs), not VMEM scratch ----
    # hidden[0] = fc1(latent); hidden[1] = 0; cell = 0
    h0_init = (jnp.dot(latent_ref[...], fc1w_ref[...],
                       preferred_element_type=jnp.float32) + fc1b_ref[...])
    # step 0's layer-0 recurrent partial (h0_init @ W_hh0), via the packed RHS
    hg0 = jnp.dot(h0_init, w_pk1, preferred_element_type=jnp.float32)[:, G:]
    g1b = jnp.zeros((B, G), jnp.float32)                    # h1_init = 0 -> h1 @ W_hh1 = 0
    c0 = jnp.zeros((B, H), jnp.float32)
    c1 = jnp.zeros((B, H), jnp.float32)
    # start one-hot token at index O-1; deferred-softmax denominator is trivially 1
    col = lax.broadcasted_iota(jnp.int32, (B, O), 1)
    e = (col == O - 1).astype(jnp.float32)                  # "exp numerator"
    inv_s = jnp.ones((B, 1), jnp.float32)                   # 1 / sum(e)

    def activate(gates, c):
        # one sigmoid + one tanh over the full (B, 4H) vreg, then 32-lane slices
        sig = jax.nn.sigmoid(gates)
        tg = jnp.tanh(gates)
        i = sig[:, 0 * H:1 * H]
        f = sig[:, 1 * H:2 * H]
        g = tg[:, 2 * H:3 * H]
        o = sig[:, 3 * H:4 * H]
        c_new = f * c + i * g
        h_new = o * jnp.tanh(c_new)
        return h_new, c_new

    def step(row, carry):
        e, inv_s, hg0, c0, g1b, c1 = carry
        # layer 0 — deferred softmax normalization:
        #   (e @ W_ih0) * (1/sum e) == softmax(prev_logits) @ W_ih0
        #   hg0 (= prev h0 @ W_hh0) was produced by the previous step's packed dot.
        xg = jnp.dot(e, w_ih0, preferred_element_type=jnp.float32)
        gates0 = xg * inv_s + hg0 + b0
        h0, c0 = activate(gates0, c0)
        # packed dot: this step's layer-1 input gates | next step's layer-0 partial
        pk1 = jnp.dot(h0, w_pk1, preferred_element_type=jnp.float32)   # (B, 8H)
        gates1 = pk1[:, :G] + g1b + b1
        hg0 = pk1[:, G:]                                     # carried to next step
        h1, c1 = activate(gates1, c1)
        # packed dot: next step's layer-1 recurrent partial | this step's fc2 logits
        pk2 = jnp.dot(h1, w_pk2, preferred_element_type=jnp.float32)   # (B, 4H+O)
        g1b = pk2[:, :G]                                     # carried to next step
        logits = pk2[:, G:] + b_fc2
        # one dense (B, O) store per step; rows row..row+B-1 of the (SEQ*B, O) output
        out_ref[pl.ds(row, B), :] = logits
        # next-step input: unnormalized softmax (normalization deferred; max-subtract
        # dropped — logits are bounded for these weight scales so exp cannot overflow)
        e = jnp.exp(logits)
        inv_s = pl.reciprocal(jnp.sum(e, axis=-1, keepdims=True), approx=True)
        return (e, inv_s, hg0, c0, g1b, c1)

    def step_unrolled(i, carry):
        base = pl.multiple_of(i * (UNROLL * B), UNROLL * B)
        for j in range(UNROLL):
            carry = step(base + j * B, carry)
        return carry

    lax.fori_loop(0, SEQ_LEN // UNROLL, step_unrolled,
                  (e, inv_s, hg0, c0, g1b, c1))


def lstm_decoder_forward(latent, params):
    B = latent.shape[0]
    O = params["fc2_w"].shape[1]
    # Cross-step same-LHS RHS packing:
    #   h0 @ [W_ih1 | W_hh0]  and  h1 @ [W_hh1 | W_fc2]
    # Order chosen so every slice of the packed result is 128-lane aligned.
    w_pack1 = jnp.concatenate([params["w_ih1"], params["w_hh0"]], axis=1)   # (H, 8H)
    w_pack2 = jnp.concatenate([params["w_hh1"], params["fc2_w"]], axis=1)   # (H, 4H+O)
    vmem = pl.BlockSpec(memory_space=pltpu.MemorySpace.VMEM)
    out2d = pl.pallas_call(
        lstm_decoder_kernel,
        out_shape=jax.ShapeDtypeStruct((SEQ_LEN * B, O), jnp.float32),
        in_specs=[vmem] * 9,
        out_specs=vmem,
    )(latent, params["fc1_w"], params["fc1_b"],
      params["w_ih0"], params["b0"],
      w_pack1, params["b1"],
      w_pack2, params["fc2_b"])
    # [SEQ*B, O] -> [SEQ, B, O] -> [B, SEQ, O] (batch_first, like PyTorch)
    out = out2d.reshape(SEQ_LEN, B, O)
    return jnp.transpose(out, (1, 0, 2))


def reference_forward(latent, params):
    """Pure-JAX reference replicating the same math (for correctness check)."""
    B = latent.shape[0]
    H = params["fc1_w"].shape[1]
    O = params["fc2_w"].shape[1]
    dot = functools.partial(jnp.dot, precision=lax.Precision.HIGHEST)

    h0 = dot(latent, params["fc1_w"]) + params["fc1_b"]
    c0 = jnp.zeros((B, H), jnp.float32)
    h1 = jnp.zeros((B, H), jnp.float32)
    c1 = jnp.zeros((B, H), jnp.float32)
    x = jnp.zeros((B, O), jnp.float32).at[:, O - 1].set(1.0)

    def cell(x, h, c, wih, whh, b):
        g = dot(x, wih) + dot(h, whh) + b
        i = jax.nn.sigmoid(g[:, :H])
        f = jax.nn.sigmoid(g[:, H:2 * H])
        gg = jnp.tanh(g[:, 2 * H:3 * H])
        o = jax.nn.sigmoid(g[:, 3 * H:])
        c = f * c + i * gg
        h = o * jnp.tanh(c)
        return h, c

    outs = []
    for _ in range(SEQ_LEN):
        h0, c0 = cell(x, h0, c0, params["w_ih0"], params["w_hh0"], params["b0"])
        h1, c1 = cell(h0, h1, c1, params["w_ih1"], params["w_hh1"], params["b1"])
        logits = dot(h1, params["fc2_w"]) + params["fc2_b"]
        outs.append(logits)
        x = jax.nn.softmax(logits, axis=-1)
    return jnp.stack(outs, axis=1)


if __name__ == "__main__":
    # Small shapes consistent with the module:
    #   batch=2, encoding_size=16, hidden_size=32, num_layers=2,
    #   output_size == input_size == 32 (alphabet incl. start token).
    B, E, H, O = 2, 16, 32, 32

    key = jax.random.PRNGKey(0)
    ks = jax.random.split(key, 12)
    bound = 1.0 / float(np.sqrt(H))
    u = lambda kk, shape: jax.random.uniform(kk, shape, jnp.float32, -bound, bound)

    params = dict(
        fc1_w=u(ks[0], (E, H)),          fc1_b=u(ks[1], (1, H)),
        w_ih0=u(ks[2], (O, 4 * H)),      w_hh0=u(ks[3], (H, 4 * H)),
        b0=u(ks[4], (1, 4 * H)) + u(ks[5], (1, 4 * H)),      # b_ih + b_hh
        w_ih1=u(ks[6], (H, 4 * H)),      w_hh1=u(ks[7], (H, 4 * H)),
        b1=u(ks[8], (1, 4 * H)) + u(ks[9], (1, 4 * H)),
        fc2_w=u(ks[10], (H, O)),         fc2_b=u(ks[11], (1, O)),
    )
    latent = jax.random.normal(jax.random.PRNGKey(42), (B, E), jnp.float32)

    out = jax.jit(lstm_decoder_forward)(latent, params)
    out = jax.block_until_ready(out)

    assert out.shape == (B, SEQ_LEN, O), out.shape
    ref = reference_forward(latent, params)
    np.testing.assert_allclose(np.asarray(out), np.asarray(ref),
                               rtol=2e-3, atol=2e-3)
    print("KERNEL_OK")
</pallas_src>

<mosaic_0001>
module attributes {stable_mosaic.version = 11 : i64} {
  func.func @lstm_decoder_kernel(%arg0: memref<2x16xf32, #tpu.memory_space<vmem>>, %arg1: memref<16x32xf32, #tpu.memory_space<vmem>>, %arg2: memref<1x32xf32, #tpu.memory_space<vmem>>, %arg3: memref<32x128xf32, #tpu.memory_space<vmem>>, %arg4: memref<1x128xf32, #tpu.memory_space<vmem>>, %arg5: memref<32x256xf32, #tpu.memory_space<vmem>>, %arg6: memref<1x128xf32, #tpu.memory_space<vmem>>, %arg7: memref<32x160xf32, #tpu.memory_space<vmem>>, %arg8: memref<1x32xf32, #tpu.memory_space<vmem>>, %arg9: memref<200x32xf32, #tpu.memory_space<vmem>>) attributes {dimension_semantics = [], scalar_prefetch = 0 : i64, scratch_operands = 0 : i64, tpu.core_type = #tpu.core_type<tc>} {
    %c0 = arith.constant 0 : index
    %c0_0 = arith.constant 0 : index
    %0 = vector.load %arg3[%c0, %c0_0] : memref<32x128xf32, #tpu.memory_space<vmem>>, vector<32x128xf32>
    %c0_1 = arith.constant 0 : index
    %c0_2 = arith.constant 0 : index
    %1 = vector.load %arg5[%c0_1, %c0_2] : memref<32x256xf32, #tpu.memory_space<vmem>>, vector<32x256xf32>
    %c0_3 = arith.constant 0 : index
    %c0_4 = arith.constant 0 : index
    %2 = vector.load %arg7[%c0_3, %c0_4] : memref<32x160xf32, #tpu.memory_space<vmem>>, vector<32x160xf32>
    %c0_5 = arith.constant 0 : index
    %c0_6 = arith.constant 0 : index
    %3 = vector.load %arg4[%c0_5, %c0_6] : memref<1x128xf32, #tpu.memory_space<vmem>>, vector<1x128xf32>
    %4 = vector.shape_cast %3 : vector<1x128xf32> to vector<1x128xf32>
    %5 = vector.broadcast %4 : vector<1x128xf32> to vector<2x128xf32>
    %c0_7 = arith.constant 0 : index
    %c0_8 = arith.constant 0 : index
    %6 = vector.load %arg6[%c0_7, %c0_8] : memref<1x128xf32, #tpu.memory_space<vmem>>, vector<1x128xf32>
    %7 = vector.shape_cast %6 : vector<1x128xf32> to vector<1x128xf32>
    %8 = vector.broadcast %7 : vector<1x128xf32> to vector<2x128xf32>
    %c0_9 = arith.constant 0 : index
    %c0_10 = arith.constant 0 : index
    %9 = vector.load %arg8[%c0_9, %c0_10] : memref<1x32xf32, #tpu.memory_space<vmem>>, vector<1x32xf32>
    %10 = vector.shape_cast %9 : vector<1x32xf32> to vector<1x32xf32>
    %11 = vector.broadcast %10 : vector<1x32xf32> to vector<2x32xf32>
    %c0_11 = arith.constant 0 : index
    %c0_12 = arith.constant 0 : index
    %12 = vector.load %arg0[%c0_11, %c0_12] : memref<2x16xf32, #tpu.memory_space<vmem>>, vector<2x16xf32>
    %c0_13 = arith.constant 0 : index
    %c0_14 = arith.constant 0 : index
    %13 = vector.load %arg1[%c0_13, %c0_14] : memref<16x32xf32, #tpu.memory_space<vmem>>, vector<16x32xf32>
    %cst = arith.constant dense<0.000000e+00> : vector<2x32xf32>
    %14 = tpu.matmul %12, %13, %cst {dimension_numbers = #tpu.dot_dimension_numbers<[1], [0], [0], [1], [0, 0, 1, 1], [], []>} : vector<2x16xf32>, vector<16x32xf32>, vector<2x32xf32> -> vector<2x32xf32>
    %c0_15 = arith.constant 0 : index
    %c0_16 = arith.constant 0 : index
    %15 = vector.load %arg2[%c0_15, %c0_16] : memref<1x32xf32, #tpu.memory_space<vmem>>, vector<1x32xf32>
    %16 = vector.broadcast %15 : vector<1x32xf32> to vector<2x32xf32>
    %17 = arith.addf %14, %16 : vector<2x32xf32>
    %cst_17 = arith.constant dense<0.000000e+00> : vector<2x256xf32>
    %18 = tpu.matmul %17, %1, %cst_17 {dimension_numbers = #tpu.dot_dimension_numbers<[1], [0], [0], [1], [0, 0, 1, 1], [], []>} : vector<2x32xf32>, vector<32x256xf32>, vector<2x256xf32> -> vector<2x256xf32>
    %19 = vector.extract_strided_slice %18 {offsets = [0, 128], sizes = [2, 128], strides = [1, 1]} : vector<2x256xf32> to vector<2x128xf32>
    %cst_18 = arith.constant 0.000000e+00 : f32
    %20 = vector.broadcast %cst_18 : f32 to vector<2x128xf32>
    %cst_19 = arith.constant 0.000000e+00 : f32
    %21 = vector.broadcast %cst_19 : f32 to vector<2x32xf32>
    %cst_20 = arith.constant 0.000000e+00 : f32
    %22 = vector.broadcast %cst_20 : f32 to vector<2x32xf32>
    %23 = tpu.iota {dimensions = array<i32: 1>} : vector<2x32xi32>
    %c31_i32 = arith.constant 31 : i32
    %24 = vector.broadcast %c31_i32 : i32 to vector<2x32xi32>
    %25 = arith.cmpi eq, %23, %24 : vector<2x32xi32>
    %26 = arith.extui %25 : vector<2x32xi1> to vector<2x32xi32>
    %27 = arith.sitofp %26 : vector<2x32xi32> to vector<2x32xf32>
    %cst_21 = arith.constant 1.000000e+00 : f32
    %28 = vector.broadcast %cst_21 : f32 to vector<2x1xf32>
    %c0_i32 = arith.constant 0 : i32
    %c25_i32 = arith.constant 25 : i32
    %29 = arith.addi %c0_i32, %c25_i32 : i32
    %c1_i32 = arith.constant 1 : i32
    %30:6 = scf.for %arg10 = %c0_i32 to %29 step %c1_i32 iter_args(%arg11 = %27, %arg12 = %28, %arg13 = %19, %arg14 = %21, %arg15 = %20, %arg16 = %22) -> (vector<2x32xf32>, vector<2x1xf32>, vector<2x128xf32>, vector<2x32xf32>, vector<2x128xf32>, vector<2x32xf32>)  : i32 {
      %c8_i32 = arith.constant 8 : i32
      %31 = arith.muli %arg10, %c8_i32 : i32
      %32 = tpu.assume_multiple %31, 8 : i32
      %c0_i32_23 = arith.constant 0 : i32
      %33 = arith.addi %32, %c0_i32_23 : i32
      %cst_24 = arith.constant dense<0.000000e+00> : vector<2x128xf32>
      %34 = tpu.matmul %arg11, %0, %cst_24 {dimension_numbers = #tpu.dot_dimension_numbers<[1], [0], [0], [1], [0, 0, 1, 1], [], []>} : vector<2x32xf32>, vector<32x128xf32>, vector<2x128xf32> -> vector<2x128xf32>
      %35 = vector.broadcast %arg12 : vector<2x1xf32> to vector<2x128xf32>
      %36 = arith.mulf %34, %35 : vector<2x128xf32>
      %37 = arith.addf %36, %arg13 : vector<2x128xf32>
      %38 = arith.addf %37, %5 : vector<2x128xf32>
      %39 = arith.negf %38 : vector<2x128xf32>
      %40 = math.exp %39 : vector<2x128xf32>
      %cst_25 = arith.constant 1.000000e+00 : f32
      %41 = vector.broadcast %cst_25 : f32 to vector<2x128xf32>
      %42 = arith.addf %41, %40 : vector<2x128xf32>
      %43 = arith.divf %41, %42 : vector<2x128xf32>
      %44 = math.tanh %38 : vector<2x128xf32>
      %45 = vector.extract_strided_slice %43 {offsets = [0, 0], sizes = [2, 32], strides = [1, 1]} : vector<2x128xf32> to vector<2x32xf32>
      %46 = vector.extract_strided_slice %43 {offsets = [0, 32], sizes = [2, 32], strides = [1, 1]} : vector<2x128xf32> to vector<2x32xf32>
      %47 = vector.extract_strided_slice %44 {offsets = [0, 64], sizes = [2, 32], strides = [1, 1]} : vector<2x128xf32> to vector<2x32xf32>
      %48 = vector.extract_strided_slice %43 {offsets = [0, 96], sizes = [2, 32], strides = [1, 1]} : vector<2x128xf32> to vector<2x32xf32>
      %49 = arith.mulf %46, %arg14 : vector<2x32xf32>
      %50 = arith.mulf %45, %47 : vector<2x32xf32>
      %51 = arith.addf %49, %50 : vector<2x32xf32>
      %52 = math.tanh %51 : vector<2x32xf32>
      %53 = arith.mulf %48, %52 : vector<2x32xf32>
      %cst_26 = arith.constant dense<0.000000e+00> : vector<2x256xf32>
      %54 = tpu.matmul %53, %1, %cst_26 {dimension_numbers = #tpu.dot_dimension_numbers<[1], [0], [0], [1], [0, 0, 1, 1], [], []>} : vector<2x32xf32>, vector<32x256xf32>, vector<2x256xf32> -> vector<2x256xf32>
      %55 = vector.extract_strided_slice %54 {offsets = [0, 0], sizes = [2, 128], strides = [1, 1]} : vector<2x256xf32> to vector<2x128xf32>
      %56 = arith.addf %55, %arg15 : vector<2x128xf32>
      %57 = arith.addf %56, %8 : vector<2x128xf32>
      %58 = vector.extract_strided_slice %54 {offsets = [0, 128], sizes = [2, 128], strides = [1, 1]} : vector<2x256xf32> to vector<2x128xf32>
      %59 = arith.negf %57 : vector<2x128xf32>
      %60 = math.exp %59 : vector<2x128xf32>
      %cst_27 = arith.constant 1.000000e+00 : f32
      %61 = vector.broadcast %cst_27 : f32 to vector<2x128xf32>
      %62 = arith.addf %61, %60 : vector<2x128xf32>
      %63 = arith.divf %61, %62 : vector<2x128xf32>
      %64 = math.tanh %57 : vector<2x128xf32>
      %65 = vector.extract_strided_slice %63 {offsets = [0, 0], sizes = [2, 32], strides = [1, 1]} : vector<2x128xf32> to vector<2x32xf32>
      %66 = vector.extract_strided_slice %63 {offsets = [0, 32], sizes = [2, 32], strides = [1, 1]} : vector<2x128xf32> to vector<2x32xf32>
      %67 = vector.extract_strided_slice %64 {offsets = [0, 64], sizes = [2, 32], strides = [1, 1]} : vector<2x128xf32> to vector<2x32xf32>
      %68 = vector.extract_strided_slice %63 {offsets = [0, 96], sizes = [2, 32], strides = [1, 1]} : vector<2x128xf32> to vector<2x32xf32>
      %69 = arith.mulf %66, %arg16 : vector<2x32xf32>
      %70 = arith.mulf %65, %67 : vector<2x32xf32>
      %71 = arith.addf %69, %70 : vector<2x32xf32>
      %72 = math.tanh %71 : vector<2x32xf32>
      %73 = arith.mulf %68, %72 : vector<2x32xf32>
      %cst_28 = arith.constant dense<0.000000e+00> : vector<2x160xf32>
      %74 = tpu.matmul %73, %2, %cst_28 {dimension_numbers = #tpu.dot_dimension_numbers<[1], [0], [0], [1], [0, 0, 1, 1], [], []>} : vector<2x32xf32>, vector<32x160xf32>, vector<2x160xf32> -> vector<2x160xf32>
      %75 = vector.extract_strided_slice %74 {offsets = [0, 0], sizes = [2, 128], strides = [1, 1]} : vector<2x160xf32> to vector<2x128xf32>
      %76 = vector.extract_strided_slice %74 {offsets = [0, 128], sizes = [2, 32], strides = [1, 1]} : vector<2x160xf32> to vector<2x32xf32>
      %77 = arith.addf %76, %11 : vector<2x32xf32>
      %78 = arith.index_cast %33 : i32 to index
      %c0_29 = arith.constant 0 : index
      %79 = vector.load %arg9[%78, %c0_29] : memref<200x32xf32, #tpu.memory_space<vmem>>, vector<2x32xf32>
      tpu.vector_store %arg9[%78, %c0_29], %77 {strides = array<i32>} : memref<200x32xf32, #tpu.memory_space<vmem>>, vector<2x32xf32>,
      %80 = math.exp %77 : vector<2x32xf32>
      %cst_30 = arith.constant dense<0.000000e+00> : vector<2xf32>
      %81 = vector.multi_reduction <add>, %80, %cst_30 [1] : vector<2x32xf32> to vector<2xf32>
      %82 = vector.shape_cast %81 : vector<2xf32> to vector<2x1xf32>
      %83 = tpu.reciprocal %82 {approx = true} : vector<2x1xf32> -> vector<2x1xf32>
      %c2_i32 = arith.constant 2 : i32
      %84 = arith.addi %32, %c2_i32 : i32
      %cst_31 = arith.constant dense<0.000000e+00> : vector<2x128xf32>
      %85 = tpu.matmul %80, %0, %cst_31 {dimension_numbers = #tpu.dot_dimension_numbers<[1], [0], [0], [1], [0, 0, 1, 1], [], []>} : vector<2x32xf32>, vector<32x128xf32>, vector<2x128xf32> -> vector<2x128xf32>
      %86 = vector.broadcast %83 : vector<2x1xf32> to vector<2x128xf32>
      %87 = arith.mulf %85, %86 : vector<2x128xf32>
      %88 = arith.addf %87, %58 : vector<2x128xf32>
      %89 = arith.addf %88, %5 : vector<2x128xf32>
      %90 = arith.negf %89 : vector<2x128xf32>
      %91 = math.exp %90 : vector<2x128xf32>
      %cst_32 = arith.constant 1.000000e+00 : f32
      %92 = vector.broadcast %cst_32 : f32 to vector<2x128xf32>
      %93 = arith.addf %92, %91 : vector<2x128xf32>
      %94 = arith.divf %92, %93 : vector<2x128xf32>
      %95 = math.tanh %89 : vector<2x128xf32>
      %96 = vector.extract_strided_slice %94 {offsets = [0, 0], sizes = [2, 32], strides = [1, 1]} : vector<2x128xf32> to vector<2x32xf32>
      %97 = vector.extract_strided_slice %94 {offsets = [0, 32], sizes = [2, 32], strides = [1, 1]} : vector<2x128xf32> to vector<2x32xf32>
      %98 = vector.extract_strided_slice %95 {offsets = [0, 64], sizes = [2, 32], strides = [1, 1]} : vector<2x128xf32> to vector<2x32xf32>
      %99 = vector.extract_strided_slice %94 {offsets = [0, 96], sizes = [2, 32], strides = [1, 1]} : vector<2x128xf32> to vector<2x32xf32>
      %100 = arith.mulf %97, %51 : vector<2x32xf32>
      %101 = arith.mulf %96, %98 : vector<2x32xf32>
      %102 = arith.addf %100, %101 : vector<2x32xf32>
      %103 = math.tanh %102 : vector<2x32xf32>
      %104 = arith.mulf %99, %103 : vector<2x32xf32>
      %cst_33 = arith.constant dense<0.000000e+00> : vector<2x256xf32>
      %105 = tpu.matmul %104, %1, %cst_33 {dimension_numbers = #tpu.dot_dimension_numbers<[1], [0], [0], [1], [0, 0, 1, 1], [], []>} : vector<2x32xf32>, vector<32x256xf32>, vector<2x256xf32> -> vector<2x256xf32>
      %106 = vector.extract_strided_slice %105 {offsets = [0, 0], sizes = [2, 128], strides = [1, 1]} : vector<2x256xf32> to vector<2x128xf32>
      %107 = arith.addf %106, %75 : vector<2x128xf32>
      %108 = arith.addf %107, %8 : vector<2x128xf32>
      %109 = vector.extract_strided_slice %105 {offsets = [0, 128], sizes = [2, 128], strides = [1, 1]} : vector<2x256xf32> to vector<2x128xf32>
      %110 = arith.negf %108 : vector<2x128xf32>
      %111 = math.exp %110 : vector<2x128xf32>
      %cst_34 = arith.constant 1.000000e+00 : f32
      %112 = vector.broadcast %cst_34 : f32 to vector<2x128xf32>
      %113 = arith.addf %112, %111 : vector<2x128xf32>
      %114 = arith.divf %112, %113 : vector<2x128xf32>
      %115 = math.tanh %108 : vector<2x128xf32>
      %116 = vector.extract_strided_slice %114 {offsets = [0, 0], sizes = [2, 32], strides = [1, 1]} : vector<2x128xf32> to vector<2x32xf32>
      %117 = vector.extract_strided_slice %114 {offsets = [0, 32], sizes = [2, 32], strides = [1, 1]} : vector<2x128xf32> to vector<2x32xf32>
      %118 = vector.extract_strided_slice %115 {offsets = [0, 64], sizes = [2, 32], strides = [1, 1]} : vector<2x128xf32> to vector<2x32xf32>
      %119 = vector.extract_strided_slice %114 {offsets = [0, 96], sizes = [2, 32], strides = [1, 1]} : vector<2x128xf32> to vector<2x32xf32>
      %120 = arith.mulf %117, %71 : vector<2x32xf32>
      %121 = arith.mulf %116, %118 : vector<2x32xf32>
      %122 = arith.addf %120, %121 : vector<2x32xf32>
      %123 = math.tanh %122 : vector<2x32xf32>
      %124 = arith.mulf %119, %123 : vector<2x32xf32>
      %cst_35 = arith.constant dense<0.000000e+00> : vector<2x160xf32>
      %125 = tpu.matmul %124, %2, %cst_35 {dimension_numbers = #tpu.dot_dimension_numbers<[1], [0], [0], [1], [0, 0, 1, 1], [], []>} : vector<2x32xf32>, vector<32x160xf32>, vector<2x160xf32> -> vector<2x160xf32>
      %126 = vector.extract_strided_slice %125 {offsets = [0, 0], sizes = [2, 128], strides = [1, 1]} : vector<2x160xf32> to vector<2x128xf32>
      %127 = vector.extract_strided_slice %125 {offsets = [0, 128], sizes = [2, 32], strides = [1, 1]} : vector<2x160xf32> to vector<2x32xf32>
      %128 = arith.addf %127, %11 : vector<2x32xf32>
      %129 = arith.index_cast %84 : i32 to index
      %c0_36 = arith.constant 0 : index
      %130 = vector.load %arg9[%129, %c0_36] : memref<200x32xf32, #tpu.memory_space<vmem>>, vector<2x32xf32>
      tpu.vector_store %arg9[%129, %c0_36], %128 {strides = array<i32>} : memref<200x32xf32, #tpu.memory_space<vmem>>, vector<2x32xf32>,
      %131 = math.exp %128 : vector<2x32xf32>
      %cst_37 = arith.constant dense<0.000000e+00> : vector<2xf32>
      %132 = vector.multi_reduction <add>, %131, %cst_37 [1] : vector<2x32xf32> to vector<2xf32>
      %133 = vector.shape_cast %132 : vector<2xf32> to vector<2x1xf32>
      %134 = tpu.reciprocal %133 {approx = true} : vector<2x1xf32> -> vector<2x1xf32>
      %c4_i32 = arith.constant 4 : i32
      %135 = arith.addi %32, %c4_i32 : i32
      %cst_38 = arith.constant dense<0.000000e+00> : vector<2x128xf32>
      %136 = tpu.matmul %131, %0, %cst_38 {dimension_numbers = #tpu.dot_dimension_numbers<[1], [0], [0], [1], [0, 0, 1, 1], [], []>} : vector<2x32xf32>, vector<32x128xf32>, vector<2x128xf32> -> vector<2x128xf32>
      %137 = vector.broadcast %134 : vector<2x1xf32> to vector<2x128xf32>
      %138 = arith.mulf %136, %137 : vector<2x128xf32>
      %139 = arith.addf %138, %109 : vector<2x128xf32>
      %140 = arith.addf %139, %5 : vector<2x128xf32>
      %141 = arith.negf %140 : vector<2x128xf32>
      %142 = math.exp %141 : vector<2x128xf32>
      %cst_39 = arith.constant 1.000000e+00 : f32
      %143 = vector.broadcast %cst_39 : f32 to vector<2x128xf32>
      %144 = arith.addf %143, %142 : vector<2x128xf32>
      %145 = arith.divf %143, %144 : vector<2x128xf32>
      %146 = math.tanh %140 : vector<2x128xf32>
      %147 = vector.extract_strided_slice %145 {offsets = [0, 0], sizes = [2, 32], strides = [1, 1]} : vector<2x128xf32> to vector<2x32xf32>
      %148 = vector.extract_strided_slice %145 {offsets = [0, 32], sizes = [2, 32], strides = [1, 1]} : vector<2x128xf32> to vector<2x32xf32>
      %149 = vector.extract_strided_slice %146 {offsets = [0, 64], sizes = [2, 32], strides = [1, 1]} : vector<2x128xf32> to vector<2x32xf32>
      %150 = vector.extract_strided_slice %145 {offsets = [0, 96], sizes = [2, 32], strides = [1, 1]} : vector<2x128xf32> to vector<2x32xf32>
      %151 = arith.mulf %148, %102 : vector<2x32xf32>
      %152 = arith.mulf %147, %149 : vector<2x32xf32>
      %153 = arith.addf %151, %152 : vector<2x32xf32>
      %154 = math.tanh %153 : vector<2x32xf32>
      %155 = arith.mulf %150, %154 : vector<2x32xf32>
      %cst_40 = arith.constant dense<0.000000e+00> : vector<2x256xf32>
      %156 = tpu.matmul %155, %1, %cst_40 {dimension_numbers = #tpu.dot_dimension_numbers<[1], [0], [0], [1], [0, 0, 1, 1], [], []>} : vector<2x32xf32>, vector<32x256xf32>, vector<2x256xf32> -> vector<2x256xf32>
      %157 = vector.extract_strided_slice %156 {offsets = [0, 0], sizes = [2, 128], strides = [1, 1]} : vector<2x256xf32> to vector<2x128xf32>
      %158 = arith.addf %157, %126 : vector<2x128xf32>
      %159 = arith.addf %158, %8 : vector<2x128xf32>
      %160 = vector.extract_strided_slice %156 {offsets = [0, 128], sizes = [2, 128], strides = [1, 1]} : vector<2x256xf32> to vector<2x128xf32>
      %161 = arith.negf %159 : vector<2x128xf32>
      %162 = math.exp %161 : vector<2x128xf32>
      %cst_41 = arith.constant 1.000000e+00 : f32
      %163 = vector.broadcast %cst_41 : f32 to vector<2x128xf32>
      %164 = arith.addf %163, %162 : vector<2x128xf32>
      %165 = arith.divf %163, %164 : vector<2x128xf32>
      %166 = math.tanh %159 : vector<2x128xf32>
      %167 = vector.extract_strided_slice %165 {offsets = [0, 0], sizes = [2, 32], strides = [1, 1]} : vector<2x128xf32> to vector<2x32xf32>
      %168 = vector.extract_strided_slice %165 {offsets = [0, 32], sizes = [2, 32], strides = [1, 1]} : vector<2x128xf32> to vector<2x32xf32>
      %169 = vector.extract_strided_slice %166 {offsets = [0, 64], sizes = [2, 32], strides = [1, 1]} : vector<2x128xf32> to vector<2x32xf32>
      %170 = vector.extract_strided_slice %165 {offsets = [0, 96], sizes = [2, 32], strides = [1, 1]} : vector<2x128xf32> to vector<2x32xf32>
      %171 = arith.mulf %168, %122 : vector<2x32xf32>
      %172 = arith.mulf %167, %169 : vector<2x32xf32>
      %173 = arith.addf %171, %172 : vector<2x32xf32>
      %174 = math.tanh %173 : vector<2x32xf32>
      %175 = arith.mulf %170, %174 : vector<2x32xf32>
      %cst_42 = arith.constant dense<0.000000e+00> : vector<2x160xf32>
      %176 = tpu.matmul %175, %2, %cst_42 {dimension_numbers = #tpu.dot_dimension_numbers<[1], [0], [0], [1], [0, 0, 1, 1], [], []>} : vector<2x32xf32>, vector<32x160xf32>, vector<2x160xf32> -> vector<2x160xf32>
      %177 = vector.extract_strided_slice %176 {offsets = [0, 0], sizes = [2, 128], strides = [1, 1]} : vector<2x160xf32> to vector<2x128xf32>
      %178 = vector.extract_strided_slice %176 {offsets = [0, 128], sizes = [2, 32], strides = [1, 1]} : vector<2x160xf32> to vector<2x32xf32>
      %179 = arith.addf %178, %11 : vector<2x32xf32>
      %180 = arith.index_cast %135 : i32 to index
      %c0_43 = arith.constant 0 : index
      %181 = vector.load %arg9[%180, %c0_43] : memref<200x32xf32, #tpu.memory_space<vmem>>, vector<2x32xf32>
      tpu.vector_store %arg9[%180, %c0_43], %179 {strides = array<i32>} : memref<200x32xf32, #tpu.memory_space<vmem>>, vector<2x32xf32>,
      %182 = math.exp %179 : vector<2x32xf32>
      %cst_44 = arith.constant dense<0.000000e+00> : vector<2xf32>
      %183 = vector.multi_reduction <add>, %182, %cst_44 [1] : vector<2x32xf32> to vector<2xf32>
      %184 = vector.shape_cast %183 : vector<2xf32> to vector<2x1xf32>
      %185 = tpu.reciprocal %184 {approx = true} : vector<2x1xf32> -> vector<2x1xf32>
      %c6_i32 = arith.constant 6 : i32
      %186 = arith.addi %32, %c6_i32 : i32
      %cst_45 = arith.constant dense<0.000000e+00> : vector<2x128xf32>
      %187 = tpu.matmul %182, %0, %cst_45 {dimension_numbers = #tpu.dot_dimension_numbers<[1], [0], [0], [1], [0, 0, 1, 1], [], []>} : vector<2x32xf32>, vector<32x128xf32>, vector<2x128xf32> -> vector<2x128xf32>
      %188 = vector.broadcast %185 : vector<2x1xf32> to vector<2x128xf32>
      %189 = arith.mulf %187, %188 : vector<2x128xf32>
      %190 = arith.addf %189, %160 : vector<2x128xf32>
      %191 = arith.addf %190, %5 : vector<2x128xf32>
      %192 = arith.negf %191 : vector<2x128xf32>
      %193 = math.exp %192 : vector<2x128xf32>
      %cst_46 = arith.constant 1.000000e+00 : f32
      %194 = vector.broadcast %cst_46 : f32 to vector<2x128xf32>
      %195 = arith.addf %194, %193 : vector<2x128xf32>
      %196 = arith.divf %194, %195 : vector<2x128xf32>
      %197 = math.tanh %191 : vector<2x128xf32>
      %198 = vector.extract_strided_slice %196 {offsets = [0, 0], sizes = [2, 32], strides = [1, 1]} : vector<2x128xf32> to vector<2x32xf32>
      %199 = vector.extract_strided_slice %196 {offsets = [0, 32], sizes = [2, 32], strides = [1, 1]} : vector<2x128xf32> to vector<2x32xf32>
      %200 = vector.extract_strided_slice %197 {offsets = [0, 64], sizes = [2, 32], strides = [1, 1]} : vector<2x128xf32> to vector<2x32xf32>
      %201 = vector.extract_strided_slice %196 {offsets = [0, 96], sizes = [2, 32], strides = [1, 1]} : vector<2x128xf32> to vector<2x32xf32>
      %202 = arith.mulf %199, %153 : vector<2x32xf32>
      %203 = arith.mulf %198, %200 : vector<2x32xf32>
      %204 = arith.addf %202, %203 : vector<2x32xf32>
      %205 = math.tanh %204 : vector<2x32xf32>
      %206 = arith.mulf %201, %205 : vector<2x32xf32>
      %cst_47 = arith.constant dense<0.000000e+00> : vector<2x256xf32>
      %207 = tpu.matmul %206, %1, %cst_47 {dimension_numbers = #tpu.dot_dimension_numbers<[1], [0], [0], [1], [0, 0, 1, 1], [], []>} : vector<2x32xf32>, vector<32x256xf32>, vector<2x256xf32> -> vector<2x256xf32>
      %208 = vector.extract_strided_slice %207 {offsets = [0, 0], sizes = [2, 128], strides = [1, 1]} : vector<2x256xf32> to vector<2x128xf32>
      %209 = arith.addf %208, %177 : vector<2x128xf32>
      %210 = arith.addf %209, %8 : vector<2x128xf32>
      %211 = vector.extract_strided_slice %207 {offsets = [0, 128], sizes = [2, 128], strides = [1, 1]} : vector<2x256xf32> to vector<2x128xf32>
      %212 = arith.negf %210 : vector<2x128xf32>
      %213 = math.exp %212 : vector<2x128xf32>
      %cst_48 = arith.constant 1.000000e+00 : f32
      %214 = vector.broadcast %cst_48 : f32 to vector<2x128xf32>
      %215 = arith.addf %214, %213 : vector<2x128xf32>
      %216 = arith.divf %214, %215 : vector<2x128xf32>
      %217 = math.tanh %210 : vector<2x128xf32>
      %218 = vector.extract_strided_slice %216 {offsets = [0, 0], sizes = [2, 32], strides = [1, 1]} : vector<2x128xf32> to vector<2x32xf32>
      %219 = vector.extract_strided_slice %216 {offsets = [0, 32], sizes = [2, 32], strides = [1, 1]} : vector<2x128xf32> to vector<2x32xf32>
      %220 = vector.extract_strided_slice %217 {offsets = [0, 64], sizes = [2, 32], strides = [1, 1]} : vector<2x128xf32> to vector<2x32xf32>
      %221 = vector.extract_strided_slice %216 {offsets = [0, 96], sizes = [2, 32], strides = [1, 1]} : vector<2x128xf32> to vector<2x32xf32>
      %222 = arith.mulf %219, %173 : vector<2x32xf32>
      %223 = arith.mulf %218, %220 : vector<2x32xf32>
      %224 = arith.addf %222, %223 : vector<2x32xf32>
      %225 = math.tanh %224 : vector<2x32xf32>
      %226 = arith.mulf %221, %225 : vector<2x32xf32>
      %cst_49 = arith.constant dense<0.000000e+00> : vector<2x160xf32>
      %227 = tpu.matmul %226, %2, %cst_49 {dimension_numbers = #tpu.dot_dimension_numbers<[1], [0], [0], [1], [0, 0, 1, 1], [], []>} : vector<2x32xf32>, vector<32x160xf32>, vector<2x160xf32> -> vector<2x160xf32>
      %228 = vector.extract_strided_slice %227 {offsets = [0, 0], sizes = [2, 128], strides = [1, 1]} : vector<2x160xf32> to vector<2x128xf32>
      %229 = vector.extract_strided_slice %227 {offsets = [0, 128], sizes = [2, 32], strides = [1, 1]} : vector<2x160xf32> to vector<2x32xf32>
      %230 = arith.addf %229, %11 : vector<2x32xf32>
      %231 = arith.index_cast %186 : i32 to index
      %c0_50 = arith.constant 0 : index
      %232 = vector.load %arg9[%231, %c0_50] : memref<200x32xf32, #tpu.memory_space<vmem>>, vector<2x32xf32>
      tpu.vector_store %arg9[%231, %c0_50], %230 {strides = array<i32>} : memref<200x32xf32, #tpu.memory_space<vmem>>, vector<2x32xf32>,
      %233 = math.exp %230 : vector<2x32xf32>
      %cst_51 = arith.constant dense<0.000000e+00> : vector<2xf32>
      %234 = vector.multi_reduction <add>, %233, %cst_51 [1] : vector<2x32xf32> to vector<2xf32>
      %235 = vector.shape_cast %234 : vector<2xf32> to vector<2x1xf32>
      %236 = tpu.reciprocal %235 {approx = true} : vector<2x1xf32> -> vector<2x1xf32>
      scf.yield %233, %236, %211, %204, %228, %224 : vector<2x32xf32>, vector<2x1xf32>, vector<2x128xf32>, vector<2x32xf32>, vector<2x128xf32>, vector<2x32xf32>
    }
    %c25_i32_22 = arith.constant 25 : i32
    return
  }
}

</mosaic_0001>

<llo_original>
// kernel: lstm_decoder_forward.1
$region0: #{lstm_decoder_forward.1}
  #allocation0 [shape = 'u32[]', space=smem, size = 0x4, offset = 0x4, fixed_abs, tag = 'smem constant byte address 0x4 - core index']
  #allocation1 [shape = 'u32[144,128]{1,0:T(1,128)}', space=vmem, size = 0x12000, scoped, tag = 'internal scratch']
  %s0 = inlined_call_operand.vmem [shape: f32[2,16], index: 0, kind: input, shape index: {}]
  %s1 = inlined_call_operand.vmem [shape: f32[16,32], index: 1, kind: input, shape index: {}]
  %s2 = inlined_call_operand.vmem [shape: f32[1,32], index: 2, kind: input, shape index: {}]
  %s3 = inlined_call_operand.vmem [shape: f32[32,128], index: 3, kind: input, shape index: {}]
  %s4 = inlined_call_operand.vmem [shape: f32[1,128], index: 4, kind: input, shape index: {}]
  %s5 = inlined_call_operand.vmem [shape: f32[32,256], index: 5, kind: input, shape index: {}]
  %s6 = inlined_call_operand.vmem [shape: f32[1,128], index: 6, kind: input, shape index: {}]
  %s7 = inlined_call_operand.vmem [shape: f32[32,160], index: 7, kind: input, shape index: {}]
  %s8 = inlined_call_operand.vmem [shape: f32[1,32], index: 8, kind: input, shape index: {}]
  %s9 = inlined_call_operand.vmem [shape: f32[200,32], index: 9, kind: output, shape index: {}]
  %s10 = sld [smem:[#allocation0]]
  $region53: #{lstm_decoder_forward.1} parent=0
    _
  %s12 = ssub.s32 1, %s10
  %s13 = scalar_select 0, %s12, %s10
  // Predicated region
  $region2: #{lstm_decoder_forward.1} parent=0 // pred_check
    _
  $region3: #{lstm_decoder_forward.1} parent=0 // pred_check_branch
    %15 = sbr.rel (0) target = $region5
  $region4: #{lstm_decoder_forward.1} parent=0 // pred_region
    _
  $region5: #{lstm_decoder_forward.1} parent=0 // pred_fallthru
    _
  // Predicated region
  $region6: #{lstm_decoder_forward.1} parent=0 // pred_check
    _
  $region7: #{lstm_decoder_forward.1} parent=0 // pred_check_branch
    %17 = sbr.rel (0) target = $region9
  $region8: #{lstm_decoder_forward.1} parent=0 // pred_region
    _
  $region9: #{lstm_decoder_forward.1} parent=0 // pred_fallthru
    _
  // Predicated region
  $region10: #{lstm_decoder_forward.1} parent=0 // pred_check
    _
  $region11: #{lstm_decoder_forward.1} parent=0 // pred_check_branch
    %19 = sbr.rel (0) target = $region13
  $region12: #{lstm_decoder_forward.1} parent=0 // pred_region
    _
  $region13: #{lstm_decoder_forward.1} parent=0 // pred_fallthru
    _
  // Predicated region
  $region14: #{lstm_decoder_forward.1} parent=0 // pred_check
    _
  $region15: #{lstm_decoder_forward.1} parent=0 // pred_check_branch
    %21 = sbr.rel (0) target = $region17
  $region16: #{lstm_decoder_forward.1} parent=0 // pred_region
    _
  $region17: #{lstm_decoder_forward.1} parent=0 // pred_fallthru
    _
  // Predicated region
  $region18: #{lstm_decoder_forward.1} parent=0 // pred_check
    _
  $region19: #{lstm_decoder_forward.1} parent=0 // pred_check_branch
    %23 = sbr.rel (0) target = $region21
  $region20: #{lstm_decoder_forward.1} parent=0 // pred_region
    _
  $region21: #{lstm_decoder_forward.1} parent=0 // pred_fallthru
    _
  // Predicated region
  $region22: #{lstm_decoder_forward.1} parent=0 // pred_check
    _
  $region23: #{lstm_decoder_forward.1} parent=0 // pred_check_branch
    %25 = sbr.rel (0) target = $region25
  $region24: #{lstm_decoder_forward.1} parent=0 // pred_region
    _
  $region25: #{lstm_decoder_forward.1} parent=0 // pred_fallthru
    _
  // Predicated region
  $region26: #{lstm_decoder_forward.1} parent=0 // pred_check
    _
  $region27: #{lstm_decoder_forward.1} parent=0 // pred_check_branch
    %27 = sbr.rel (0) target = $region29
  $region28: #{lstm_decoder_forward.1} parent=0 // pred_region
    _
  $region29: #{lstm_decoder_forward.1} parent=0 // pred_fallthru
    _
  // Predicated region
  $region30: #{lstm_decoder_forward.1} parent=0 // pred_check
    _
  $region31: #{lstm_decoder_forward.1} parent=0 // pred_check_branch
    %29 = sbr.rel (0) target = $region33
  $region32: #{lstm_decoder_forward.1} parent=0 // pred_region
    _
  $region33: #{lstm_decoder_forward.1} parent=0 // pred_fallthru
    _
  // Predicated region
  $region34: #{lstm_decoder_forward.1} parent=0 // pred_check
    _
  $region35: #{lstm_decoder_forward.1} parent=0 // pred_check_branch
    %31 = sbr.rel (0) target = $region37
  $region36: #{lstm_decoder_forward.1} parent=0 // pred_region
    _
  $region37: #{lstm_decoder_forward.1} parent=0 // pred_fallthru
    _
  %v32 = vld [vmem:[%s3] sm:$0xff]
  %v33 = vld [vmem:[%s3 + $0x8] sm:$0xff]
  %v34 = vld [vmem:[%s3 + $0x10] sm:$0xff]
  %v35 = vld [vmem:[%s3 + $0x18] sm:$0xff]
  %v36 = vld [vmem:[%s5] sm:$0xff]
  %v37 = vld [vmem:[%s5 + $0x8] sm:$0xff]
  %v38 = vld [vmem:[%s5 + $0x10] sm:$0xff]
  %v39 = vld [vmem:[%s5 + $0x18] sm:$0xff]
  %v40 = vld [vmem:[%s5 + $0x20] sm:$0xff]
  %v41 = vld [vmem:[%s5 + $0x28] sm:$0xff]
  %v42 = vld [vmem:[%s5 + $0x30] sm:$0xff]
  %v43 = vld [vmem:[%s5 + $0x38] sm:$0xff]
  %v44 = vld [vmem:[%s7] sm:$0xff]
  %v45 = vld [vmem:[%s7 + $0x8] sm:$0xff]
  %v46 = vld [vmem:[%s7 + $0x10] sm:$0xff]
  %v47 = vld [vmem:[%s7 + $0x18] sm:$0xff]
  %v48 = vld [vmem:[%s7 + $0x20] sm:$0xff]
  %v49 = vld [vmem:[%s7 + $0x28] sm:$0xff]
  %v50 = vld [vmem:[%s7 + $0x30] sm:$0xff]
  %v51 = vld [vmem:[%s7 + $0x38] sm:$0xff]
  %v52 = vld [vmem:[%s4] sm:$0x1]
  %v54 = vlaneseq
  %v55 = vshrl.u32 %v54, 7
  %v56 = vsub.s32 0, %v55
  %v57 = vrot.slane %v52, %v56
  %v59 = vld [vmem:[%s6] sm:$0x1]
  %v61 = vlaneseq
  %v62 = vshrl.u32 %v61, 7
  %v63 = vsub.s32 0, %v62
  %v64 = vrot.slane %v59, %v63
  %v66 = vld [vmem:[%s8] sm:$0x1]
  %v68 = vlaneseq
  %v69 = vshrl.u32 %v68, 7
  %v70 = vsub.s32 0, %v69
  %v71 = vrot.slane %v66, %v70
  %v73 = vld [vmem:[%s0] sm:$0x3]
  %v74 = vld [vmem:[%s1] sm:$0xff]
  %v75 = vld [vmem:[%s1 + $0x8] sm:$0xff]
  %v76 = vld [vmem:[%s2] sm:$0x1]
  %v78 = vlaneseq
  %v79 = vshrl.u32 %v78, 7
  %v80 = vsub.s32 0, %v79
  %v81 = vrot.slane %v76, %v80
  %vm83 = vcmask 130048
  %v85 = vsel %vm83, %v73, 0
  %87 = vmatprep.subr.mxu0 0.0
  %88 = vmatpush1.msra.mxu0 0.0
  %89 = vmatprep.subr.mxu0 0.0
  %90 = vmatpush1.msra.mxu0 0.0
  %91 = vmatprep.subr.mxu0 0.0
  %92 = vmatpush1.msra.mxu0 0.0
  %93 = vmatprep.subr.mxu0 0.0
  %94 = vmatpush1.msra.mxu0 0.0
  %95 = vmatprep.subr.mxu0 0.0
  %96 = vmatpush1.msra.mxu0 0.0
  %97 = vmatprep.subr.mxu0 0.0
  %98 = vmatpush1.msra.mxu0 0.0
  %99 = vmatprep.subr.mxu0 0.0
  %100 = vmatpush1.msra.mxu0 0.0
  %101 = vmatprep.subr.mxu0 0.0
  %102 = vmatpush1.msra.mxu0 0.0
  %103 = vmatprep.subr.mxu0 0.0
  %104 = vmatpush1.msra.mxu0 0.0
  %105 = vmatprep.subr.mxu0 0.0
  %106 = vmatpush1.msra.mxu0 0.0
  %107 = vmatprep.subr.mxu0 0.0
  %108 = vmatpush1.msra.mxu0 0.0
  %109 = vmatprep.subr.mxu0 0.0
  %110 = vmatpush1.msra.mxu0 0.0
  %111 = vmatprep.subr.mxu0 0.0
  %112 = vmatpush1.msra.mxu0 0.0
  %113 = vmatprep.subr.mxu0 0.0
  %114 = vmatpush1.msra.mxu0 0.0
  %115 = vmatprep.subr.mxu0 0.0
  %116 = vmatpush1.msra.mxu0 %v75
  %117 = vmatprep.subr.mxu0 0.0
  %118 = vmatpush1.msra.mxu0 %v74
  %119 = vmatprep.subr.mxu0 0.0
  %120 = vmatpush2.msra.mxu0 0.0
  %121 = vmatprep.subr.mxu0 0.0
  %122 = vmatpush2.msra.mxu0 0.0
  %123 = vmatprep.subr.mxu0 0.0
  %124 = vmatpush2.msra.mxu0 0.0
  %125 = vmatprep.subr.mxu0 0.0
  %126 = vmatpush2.msra.mxu0 0.0
  %127 = vmatprep.subr.mxu0 0.0
  %128 = vmatpush2.msra.mxu0 0.0
  %129 = vmatprep.subr.mxu0 0.0
  %130 = vmatpush2.msra.mxu0 0.0
  %131 = vmatprep.subr.mxu0 0.0
  %132 = vmatpush2.msra.mxu0 0.0
  %133 = vmatprep.subr.mxu0 0.0
  %134 = vmatpush2.msra.mxu0 0.0
  %135 = vmatprep.subr.mxu0 0.0
  %136 = vmatpush2.msra.mxu0 0.0
  %137 = vmatprep.subr.mxu0 0.0
  %138 = vmatpush2.msra.mxu0 0.0
  %139 = vmatprep.subr.mxu0 0.0
  %140 = vmatpush2.msra.mxu0 0.0
  %141 = vmatprep.subr.mxu0 0.0
  %142 = vmatpush2.msra.mxu0 0.0
  %143 = vmatprep.subr.mxu0 0.0
  %144 = vmatpush2.msra.mxu0 0.0
  %145 = vmatprep.subr.mxu0 0.0
  %146 = vmatpush2.msra.mxu0 0.0
  %147 = vmatprep.subr.mxu0 0.0
  %148 = vmatpush2.msra.mxu0 0.0
  %149 = vmatprep.subr.mxu0 0.0
  %150 = vmatpush2.msra.mxu0 0.0
  %151 = vmatprep.mubr.f32.mxu0 0.0
  %152 = vmatmul.mubr.f32.gmra.mxu0 %v85
  %v153 = vpop.f32.mrf.mxu0
  %v154 = vadd.f32 %v81, %v153
  %v155 = vpop.f32.mrf.mxu0
  %156 = vdwg.mxu0
  %vm157 = vcmask 261120
  %v159 = vsel %vm157, %v154, 0
  %161 = vmatprep.subr.mxu0 0.0
  %162 = vmatpush1.msra.mxu0 0.0
  %163 = vmatprep.subr.mxu0 0.0
  %164 = vmatpush1.msra.mxu0 0.0
  %165 = vmatprep.subr.mxu0 0.0
  %166 = vmatpush1.msra.mxu0 0.0
  %167 = vmatprep.subr.mxu0 0.0
  %168 = vmatpush1.msra.mxu0 0.0
  %169 = vmatprep.subr.mxu0 0.0
  %170 = vmatpush1.msra.mxu0 0.0
  %171 = vmatprep.subr.mxu0 0.0
  %172 = vmatpush1.msra.mxu0 0.0
  %173 = vmatprep.subr.mxu0 0.0
  %174 = vmatpush1.msra.mxu0 0.0
  %175 = vmatprep.subr.mxu0 0.0
  %176 = vmatpush1.msra.mxu0 0.0
  %177 = vmatprep.subr.mxu0 0.0
  %178 = vmatpush1.msra.mxu0 0.0
  %179 = vmatprep.subr.mxu0 0.0
  %180 = vmatpush1.msra.mxu0 0.0
  %181 = vmatprep.subr.mxu0 0.0
  %182 = vmatpush1.msra.mxu0 0.0
  %183 = vmatprep.subr.mxu0 0.0
  %184 = vmatpush1.msra.mxu0 0.0
  %185 = vmatprep.subr.mxu0 %v43
  %186 = vmatpush1.msra.mxu0 %v42
  %187 = vmatprep.subr.mxu0 %v41
  %188 = vmatpush1.msra.mxu0 %v40
  %189 = vmatprep.subr.mxu0 %v39
  %190 = vmatpush1.msra.mxu0 %v38
  %191 = vmatprep.subr.mxu0 %v37
  %192 = vmatpush1.msra.mxu0 %v36
  %193 = vmatprep.subr.mxu0 0.0
  %194 = vmatpush2.msra.mxu0 0.0
  %195 = vmatprep.subr.mxu0 0.0
  %196 = vmatpush2.msra.mxu0 0.0
  %197 = vmatprep.subr.mxu0 0.0
  %198 = vmatpush2.msra.mxu0 0.0
  %199 = vmatprep.subr.mxu0 0.0
  %200 = vmatpush2.msra.mxu0 0.0
  %201 = vmatprep.subr.mxu0 0.0
  %202 = vmatpush2.msra.mxu0 0.0
  %203 = vmatprep.subr.mxu0 0.0
  %204 = vmatpush2.msra.mxu0 0.0
  %205 = vmatprep.subr.mxu0 0.0
  %206 = vmatpush2.msra.mxu0 0.0
  %207 = vmatprep.subr.mxu0 0.0
  %208 = vmatpush2.msra.mxu0 0.0
  %209 = vmatprep.subr.mxu0 0.0
  %210 = vmatpush2.msra.mxu0 0.0
  %211 = vmatprep.subr.mxu0 0.0
  %212 = vmatpush2.msra.mxu0 0.0
  %213 = vmatprep.subr.mxu0 0.0
  %214 = vmatpush2.msra.mxu0 0.0
  %215 = vmatprep.subr.mxu0 0.0
  %216 = vmatpush2.msra.mxu0 0.0
  %217 = vmatprep.subr.mxu0 0.0
  %218 = vmatpush2.msra.mxu0 0.0
  %219 = vmatprep.subr.mxu0 0.0
  %220 = vmatpush2.msra.mxu0 0.0
  %221 = vmatprep.subr.mxu0 0.0
  %222 = vmatpush2.msra.mxu0 0.0
  %223 = vmatprep.subr.mxu0 0.0
  %224 = vmatpush2.msra.mxu0 0.0
  %225 = vmatprep.mubr.f32.mxu0 0.0
  %226 = vmatmul.mubr.f32.gmra.mxu0 %v159
  %v227 = vpop.f32.mrf.mxu0
  %v228 = vpop.f32.mrf.mxu0
  %v229 = vadd.f32 0.0, %v228
  %230 = vdwg.mxu0
  %v231 = vlaneseq
  %v232 = vand.u32 %v231, 127
  %vm233 = vcmp.eq.s32.totalorder %v232, 31
  %v234 = vsel %vm233, 1, 0
  %v235 = vcvt.s32.f32 %v234
  loop: start=0, step=1, limit=25
  $region38: #{lstm_decoder_forward.1} parent=0 // loop_pre_header
    _
  $region39: #{lstm_decoder_forward.1} parent=0 // loop_header
    %s237 = sphi 0, %s241
    %p238 = scmp.ge.s32.totalorder %s237, 25
    %v242 = vphi %v235, %v1396
    %v243 = vphi 1.0, %v1400
    %v244 = vphi %v229, %v1288
    %v245 = vphi 0.0, %v1207
    %v246 = vphi 0.0, %v1388
    %v247 = vphi 0.0, %v1309
  $region40: #{lstm_decoder_forward.1} parent=0 // loop_header_branch
    %240 = sbr.rel (%p238) target = $region44
  $region41: #{lstm_decoder_forward.1} parent=0 // loop_body
    %s248 = smul.u32 %s237, 8
    %v250 = vsel %vm157, %v242, 0
    %252 = vmatprep.subr.mxu0 0.0
    %253 = vmatpush1.msra.mxu0 0.0
    %254 = vmatprep.subr.mxu0 0.0
    %255 = vmatpush1.msra.mxu0 0.0
    %256 = vmatprep.subr.mxu0 0.0
    %257 = vmatpush1.msra.mxu0 0.0
    %258 = vmatprep.subr.mxu0 0.0
    %259 = vmatpush1.msra.mxu0 0.0
    %260 = vmatprep.subr.mxu0 0.0
    %261 = vmatpush1.msra.mxu0 0.0
    %262 = vmatprep.subr.mxu0 0.0
    %263 = vmatpush1.msra.mxu0 0.0
    %264 = vmatprep.subr.mxu0 0.0
    %265 = vmatpush1.msra.mxu0 0.0
    %266 = vmatprep.subr.mxu0 0.0
    %267 = vmatpush1.msra.mxu0 0.0
    %268 = vmatprep.subr.mxu0 0.0
    %269 = vmatpush1.msra.mxu0 0.0
    %270 = vmatprep.subr.mxu0 0.0
    %271 = vmatpush1.msra.mxu0 0.0
    %272 = vmatprep.subr.mxu0 0.0
    %273 = vmatpush1.msra.mxu0 0.0
    %274 = vmatprep.subr.mxu0 0.0
    %275 = vmatpush1.msra.mxu0 0.0
    %276 = vmatprep.subr.mxu0 0.0
    %277 = vmatpush1.msra.mxu0 %v35
    %278 = vmatprep.subr.mxu0 0.0
    %279 = vmatpush1.msra.mxu0 %v34
    %280 = vmatprep.subr.mxu0 0.0
    %281 = vmatpush1.msra.mxu0 %v33
    %282 = vmatprep.subr.mxu0 0.0
    %283 = vmatpush1.msra.mxu0 %v32
    %284 = vmatprep.subr.mxu0 0.0
    %285 = vmatpush2.msra.mxu0 0.0
    %286 = vmatprep.subr.mxu0 0.0
    %287 = vmatpush2.msra.mxu0 0.0
    %288 = vmatprep.subr.mxu0 0.0
    %289 = vmatpush2.msra.mxu0 0.0
    %290 = vmatprep.subr.mxu0 0.0
    %291 = vmatpush2.msra.mxu0 0.0
    %292 = vmatprep.subr.mxu0 0.0
    %293 = vmatpush2.msra.mxu0 0.0
    %294 = vmatprep.subr.mxu0 0.0
    %295 = vmatpush2.msra.mxu0 0.0
    %296 = vmatprep.subr.mxu0 0.0
    %297 = vmatpush2.msra.mxu0 0.0
    %298 = vmatprep.subr.mxu0 0.0
    %299 = vmatpush2.msra.mxu0 0.0
    %300 = vmatprep.subr.mxu0 0.0
    %301 = vmatpush2.msra.mxu0 0.0
    %302 = vmatprep.subr.mxu0 0.0
    %303 = vmatpush2.msra.mxu0 0.0
    %304 = vmatprep.subr.mxu0 0.0
    %305 = vmatpush2.msra.mxu0 0.0
    %306 = vmatprep.subr.mxu0 0.0
    %307 = vmatpush2.msra.mxu0 0.0
    %308 = vmatprep.subr.mxu0 0.0
    %309 = vmatpush2.msra.mxu0 0.0
    %310 = vmatprep.subr.mxu0 0.0
    %311 = vmatpush2.msra.mxu0 0.0
    %312 = vmatprep.subr.mxu0 0.0
    %313 = vmatpush2.msra.mxu0 0.0
    %314 = vmatprep.subr.mxu0 0.0
    %315 = vmatpush2.msra.mxu0 0.0
    %316 = vmatprep.mubr.f32.mxu0 0.0
    %317 = vmatmul.mubr.f32.gmra.mxu0 %v250
    %v318 = vpop.f32.mrf.mxu0
    %v319 = vadd.f32 0.0, %v318
    %v320 = vpop.f32.mrf.mxu0
    %321 = vdwg.mxu0
    %v322 = vmul.f32 %v319, %v243
    %v323 = vadd.f32 %v322, %v244
    %v324 = vadd.f32 %v323, %v57
    %v325 = vxor.u32 %v324, 2147483648
    %v326 = vmul.f32 %v325, 1.442695
    %v327 = vpow.pop %v326
    %v328 = vadd.f32 %v327, 1.0
    %v329 = vrcp.pop %v328
    %v330 = vmul.f32 1.0, %v329
    %v331 = vtanh.pop %v324
    %v332 = vmul.f32 %v330, %v245
    %334 = vrot.lane.b32.xlu0 %v331, 64
    %v335 = vpop.permute.xlu0 %334
    %v337 = vmul.f32 %v330, %v335
    %339 = vrot.lane.b32.xlu0 %v337, 32
    %v340 = vpop.permute.xlu0 %339
    %v342 = vadd.f32 %v332, %v340
    %v343 = vtanh.pop %v342
    %345 = vrot.lane.b32.xlu0 %v343, 64
    %v346 = vpop.permute.xlu0 %345
    %v348 = vmul.f32 %v330, %v346
    %350 = vrot.lane.b32.xlu0 %v348, 32
    %v351 = vpop.permute.xlu0 %350
    %v352 = vsel %vm157, %v351, 0
    %354 = vmatprep.subr.mxu0 0.0
    %355 = vmatpush1.msra.mxu0 0.0
    %356 = vmatprep.subr.mxu0 0.0
    %357 = vmatpush1.msra.mxu0 0.0
    %358 = vmatprep.subr.mxu0 0.0
    %359 = vmatpush1.msra.mxu0 0.0
    %360 = vmatprep.subr.mxu0 0.0
    %361 = vmatpush1.msra.mxu0 0.0
    %362 = vmatprep.subr.mxu0 0.0
    %363 = vmatpush1.msra.mxu0 0.0
    %364 = vmatprep.subr.mxu0 0.0
    %365 = vmatpush1.msra.mxu0 0.0
    %366 = vmatprep.subr.mxu0 0.0
    %367 = vmatpush1.msra.mxu0 0.0
    %368 = vmatprep.subr.mxu0 0.0
    %369 = vmatpush1.msra.mxu0 0.0
    %370 = vmatprep.subr.mxu0 0.0
    %371 = vmatpush1.msra.mxu0 0.0
    %372 = vmatprep.subr.mxu0 0.0
    %373 = vmatpush1.msra.mxu0 0.0
    %374 = vmatprep.subr.mxu0 0.0
    %375 = vmatpush1.msra.mxu0 0.0
    %376 = vmatprep.subr.mxu0 0.0
    %377 = vmatpush1.msra.mxu0 0.0
    %378 = vmatprep.subr.mxu0 %v43
    %379 = vmatpush1.msra.mxu0 %v42
    %380 = vmatprep.subr.mxu0 %v41
    %381 = vmatpush1.msra.mxu0 %v40
    %382 = vmatprep.subr.mxu0 %v39
    %383 = vmatpush1.msra.mxu0 %v38
    %384 = vmatprep.subr.mxu0 %v37
    %385 = vmatpush1.msra.mxu0 %v36
    %386 = vmatprep.subr.mxu0 0.0
    %387 = vmatpush2.msra.mxu0 0.0
    %388 = vmatprep.subr.mxu0 0.0
    %389 = vmatpush2.msra.mxu0 0.0
    %390 = vmatprep.subr.mxu0 0.0
    %391 = vmatpush2.msra.mxu0 0.0
    %392 = vmatprep.subr.mxu0 0.0
    %393 = vmatpush2.msra.mxu0 0.0
    %394 = vmatprep.subr.mxu0 0.0
    %395 = vmatpush2.msra.mxu0 0.0
    %396 = vmatprep.subr.mxu0 0.0
    %397 = vmatpush2.msra.mxu0 0.0
    %398 = vmatprep.subr.mxu0 0.0
    %399 = vmatpush2.msra.mxu0 0.0
    %400 = vmatprep.subr.mxu0 0.0
    %401 = vmatpush2.msra.mxu0 0.0
    %402 = vmatprep.subr.mxu0 0.0
    %403 = vmatpush2.msra.mxu0 0.0
    %404 = vmatprep.subr.mxu0 0.0
    %405 = vmatpush2.msra.mxu0 0.0
    %406 = vmatprep.subr.mxu0 0.0
    %407 = vmatpush2.msra.mxu0 0.0
    %408 = vmatprep.subr.mxu0 0.0
    %409 = vmatpush2.msra.mxu0 0.0
    %410 = vmatprep.subr.mxu0 0.0
    %411 = vmatpush2.msra.mxu0 0.0
    %412 = vmatprep.subr.mxu0 0.0
    %413 = vmatpush2.msra.mxu0 0.0
    %414 = vmatprep.subr.mxu0 0.0
    %415 = vmatpush2.msra.mxu0 0.0
    %416 = vmatprep.subr.mxu0 0.0
    %417 = vmatpush2.msra.mxu0 0.0
    %418 = vmatprep.mubr.f32.mxu0 0.0
    %419 = vmatmul.mubr.f32.gmra.mxu0 %v352
    %v420 = vpop.f32.mrf.mxu0
    %v421 = vadd.f32 0.0, %v420
    %v422 = vpop.f32.mrf.mxu0
    %v423 = vadd.f32 0.0, %v422
    %424 = vdwg.mxu0
    %v425 = vadd.f32 %v421, %v246
    %v426 = vadd.f32 %v425, %v64
    %v427 = vxor.u32 %v426, 2147483648
    %v428 = vmul.f32 %v427, 1.442695
    %v429 = vpow.pop %v428
    %v430 = vadd.f32 %v429, 1.0
    %v431 = vrcp.pop %v430
    %v432 = vmul.f32 1.0, %v431
    %v433 = vtanh.pop %v426
    %v434 = vmul.f32 %v432, %v247
    %436 = vrot.lane.b32.xlu0 %v433, 64
    %v437 = vpop.permute.xlu0 %436
    %v439 = vmul.f32 %v432, %v437
    %441 = vrot.lane.b32.xlu0 %v439, 32
    %v442 = vpop.permute.xlu0 %441
    %v444 = vadd.f32 %v434, %v442
    %v445 = vtanh.pop %v444
    %447 = vrot.lane.b32.xlu0 %v445, 64
    %v448 = vpop.permute.xlu0 %447
    %v450 = vmul.f32 %v432, %v448
    %452 = vrot.lane.b32.xlu0 %v450, 32
    %v453 = vpop.permute.xlu0 %452
    %v454 = vsel %vm157, %v453, 0
    %456 = vmatprep.subr.mxu0 0.0
    %457 = vmatpush1.msra.mxu0 0.0
    %458 = vmatprep.subr.mxu0 0.0
    %459 = vmatpush1.msra.mxu0 0.0
    %460 = vmatprep.subr.mxu0 0.0
    %461 = vmatpush1.msra.mxu0 0.0
    %462 = vmatprep.subr.mxu0 0.0
    %463 = vmatpush1.msra.mxu0 0.0
    %464 = vmatprep.subr.mxu0 0.0
    %465 = vmatpush1.msra.mxu0 0.0
    %466 = vmatprep.subr.mxu0 0.0
    %467 = vmatpush1.msra.mxu0 0.0
    %468 = vmatprep.subr.mxu0 0.0
    %469 = vmatpush1.msra.mxu0 0.0
    %470 = vmatprep.subr.mxu0 0.0
    %471 = vmatpush1.msra.mxu0 0.0
    %472 = vmatprep.subr.mxu0 0.0
    %473 = vmatpush1.msra.mxu0 0.0
    %474 = vmatprep.subr.mxu0 0.0
    %475 = vmatpush1.msra.mxu0 0.0
    %476 = vmatprep.subr.mxu0 0.0
    %477 = vmatpush1.msra.mxu0 0.0
    %478 = vmatprep.subr.mxu0 0.0
    %479 = vmatpush1.msra.mxu0 0.0
    %480 = vmatprep.subr.mxu0 %v51
    %481 = vmatpush1.msra.mxu0 %v50
    %482 = vmatprep.subr.mxu0 %v49
    %483 = vmatpush1.msra.mxu0 %v48
    %484 = vmatprep.subr.mxu0 %v47
    %485 = vmatpush1.msra.mxu0 %v46
    %486 = vmatprep.subr.mxu0 %v45
    %487 = vmatpush1.msra.mxu0 %v44
    %488 = vmatprep.subr.mxu0 0.0
    %489 = vmatpush2.msra.mxu0 0.0
    %490 = vmatprep.subr.mxu0 0.0
    %491 = vmatpush2.msra.mxu0 0.0
    %492 = vmatprep.subr.mxu0 0.0
    %493 = vmatpush2.msra.mxu0 0.0
    %494 = vmatprep.subr.mxu0 0.0
    %495 = vmatpush2.msra.mxu0 0.0
    %496 = vmatprep.subr.mxu0 0.0
    %497 = vmatpush2.msra.mxu0 0.0
    %498 = vmatprep.subr.mxu0 0.0
    %499 = vmatpush2.msra.mxu0 0.0
    %500 = vmatprep.subr.mxu0 0.0
    %501 = vmatpush2.msra.mxu0 0.0
    %502 = vmatprep.subr.mxu0 0.0
    %503 = vmatpush2.msra.mxu0 0.0
    %504 = vmatprep.subr.mxu0 0.0
    %505 = vmatpush2.msra.mxu0 0.0
    %506 = vmatprep.subr.mxu0 0.0
    %507 = vmatpush2.msra.mxu0 0.0
    %508 = vmatprep.subr.mxu0 0.0
    %509 = vmatpush2.msra.mxu0 0.0
    %510 = vmatprep.subr.mxu0 0.0
    %511 = vmatpush2.msra.mxu0 0.0
    %512 = vmatprep.subr.mxu0 0.0
    %513 = vmatpush2.msra.mxu0 0.0
    %514 = vmatprep.subr.mxu0 0.0
    %515 = vmatpush2.msra.mxu0 0.0
    %516 = vmatprep.subr.mxu0 0.0
    %517 = vmatpush2.msra.mxu0 0.0
    %518 = vmatprep.subr.mxu0 0.0
    %519 = vmatpush2.msra.mxu0 0.0
    %520 = vmatprep.mubr.f32.mxu0 0.0
    %521 = vmatmul.mubr.f32.gmra.mxu0 %v454
    %v522 = vpop.f32.mrf.mxu0
    %v523 = vadd.f32 0.0, %v522
    %v524 = vpop.f32.mrf.mxu0
    %v525 = vadd.f32 0.0, %v524
    %526 = vdwg.mxu0
    %v527 = vadd.f32 %v525, %v71
    %s528 = scalar_lea.vmem %s9, %s248
    %vm529 = vcmask 254976
    %530 = vst.msk [vmem:[%s528] sm:$0x3] %vm529, %v527
    %v531 = vmul.f32 %v527, 1.442695
    %v532 = vpow.pop %v531
    %v533 = vsel %vm529, %v532, 0.0
    %534 = vadd.xlane.f32.xlu0 %v533
    %v535 = vpop.xlane.xlu0 %534
    %v536 = vrcp.pop %v535
    %s537 = sadd.s32 %s248, 2
    %v539 = vsel %vm157, %v532, 0
    %541 = vmatprep.subr.mxu0 0.0
    %542 = vmatpush1.msra.mxu0 0.0
    %543 = vmatprep.subr.mxu0 0.0
    %544 = vmatpush1.msra.mxu0 0.0
    %545 = vmatprep.subr.mxu0 0.0
    %546 = vmatpush1.msra.mxu0 0.0
    %547 = vmatprep.subr.mxu0 0.0
    %548 = vmatpush1.msra.mxu0 0.0
    %549 = vmatprep.subr.mxu0 0.0
    %550 = vmatpush1.msra.mxu0 0.0
    %551 = vmatprep.subr.mxu0 0.0
    %552 = vmatpush1.msra.mxu0 0.0
    %553 = vmatprep.subr.mxu0 0.0
    %554 = vmatpush1.msra.mxu0 0.0
    %555 = vmatprep.subr.mxu0 0.0
    %556 = vmatpush1.msra.mxu0 0.0
    %557 = vmatprep.subr.mxu0 0.0
    %558 = vmatpush1.msra.mxu0 0.0
    %559 = vmatprep.subr.mxu0 0.0
    %560 = vmatpush1.msra.mxu0 0.0
    %561 = vmatprep.subr.mxu0 0.0
    %562 = vmatpush1.msra.mxu0 0.0
    %563 = vmatprep.subr.mxu0 0.0
    %564 = vmatpush1.msra.mxu0 0.0
    %565 = vmatprep.subr.mxu0 0.0
    %566 = vmatpush1.msra.mxu0 %v35
    %567 = vmatprep.subr.mxu0 0.0
    %568 = vmatpush1.msra.mxu0 %v34
    %569 = vmatprep.subr.mxu0 0.0
    %570 = vmatpush1.msra.mxu0 %v33
    %571 = vmatprep.subr.mxu0 0.0
    %572 = vmatpush1.msra.mxu0 %v32
    %573 = vmatprep.subr.mxu0 0.0
    %574 = vmatpush2.msra.mxu0 0.0
    %575 = vmatprep.subr.mxu0 0.0
    %576 = vmatpush2.msra.mxu0 0.0
    %577 = vmatprep.subr.mxu0 0.0
    %578 = vmatpush2.msra.mxu0 0.0
    %579 = vmatprep.subr.mxu0 0.0
    %580 = vmatpush2.msra.mxu0 0.0
    %581 = vmatprep.subr.mxu0 0.0
    %582 = vmatpush2.msra.mxu0 0.0
    %583 = vmatprep.subr.mxu0 0.0
    %584 = vmatpush2.msra.mxu0 0.0
    %585 = vmatprep.subr.mxu0 0.0
    %586 = vmatpush2.msra.mxu0 0.0
    %587 = vmatprep.subr.mxu0 0.0
    %588 = vmatpush2.msra.mxu0 0.0
    %589 = vmatprep.subr.mxu0 0.0
    %590 = vmatpush2.msra.mxu0 0.0
    %591 = vmatprep.subr.mxu0 0.0
    %592 = vmatpush2.msra.mxu0 0.0
    %593 = vmatprep.subr.mxu0 0.0
    %594 = vmatpush2.msra.mxu0 0.0
    %595 = vmatprep.subr.mxu0 0.0
    %596 = vmatpush2.msra.mxu0 0.0
    %597 = vmatprep.subr.mxu0 0.0
    %598 = vmatpush2.msra.mxu0 0.0
    %599 = vmatprep.subr.mxu0 0.0
    %600 = vmatpush2.msra.mxu0 0.0
    %601 = vmatprep.subr.mxu0 0.0
    %602 = vmatpush2.msra.mxu0 0.0
    %603 = vmatprep.subr.mxu0 0.0
    %604 = vmatpush2.msra.mxu0 0.0
    %605 = vmatprep.mubr.f32.mxu0 0.0
    %606 = vmatmul.mubr.f32.gmra.mxu0 %v539
    %v607 = vpop.f32.mrf.mxu0
    %v608 = vadd.f32 0.0, %v607
    %v609 = vpop.f32.mrf.mxu0
    %610 = vdwg.mxu0
    %v611 = vmul.f32 %v608, %v536
    %v612 = vadd.f32 %v611, %v423
    %v613 = vadd.f32 %v612, %v57
    %v614 = vxor.u32 %v613, 2147483648
    %v615 = vmul.f32 %v614, 1.442695
    %v616 = vpow.pop %v615
    %v617 = vadd.f32 %v616, 1.0
    %v618 = vrcp.pop %v617
    %v619 = vmul.f32 1.0, %v618
    %v620 = vtanh.pop %v613
    %v621 = vmul.f32 %v619, %v342
    %623 = vrot.lane.b32.xlu0 %v620, 64
    %v624 = vpop.permute.xlu0 %623
    %v626 = vmul.f32 %v619, %v624
    %628 = vrot.lane.b32.xlu0 %v626, 32
    %v629 = vpop.permute.xlu0 %628
    %v631 = vadd.f32 %v621, %v629
    %v632 = vtanh.pop %v631
    %634 = vrot.lane.b32.xlu0 %v632, 64
    %v635 = vpop.permute.xlu0 %634
    %v637 = vmul.f32 %v619, %v635
    %639 = vrot.lane.b32.xlu0 %v637, 32
    %v640 = vpop.permute.xlu0 %639
    %v641 = vsel %vm157, %v640, 0
    %643 = vmatprep.subr.mxu0 0.0
    %644 = vmatpush1.msra.mxu0 0.0
    %645 = vmatprep.subr.mxu0 0.0
    %646 = vmatpush1.msra.mxu0 0.0
    %647 = vmatprep.subr.mxu0 0.0
    %648 = vmatpush1.msra.mxu0 0.0
    %649 = vmatprep.subr.mxu0 0.0
    %650 = vmatpush1.msra.mxu0 0.0
    %651 = vmatprep.subr.mxu0 0.0
    %652 = vmatpush1.msra.mxu0 0.0
    %653 = vmatprep.subr.mxu0 0.0
    %654 = vmatpush1.msra.mxu0 0.0
    %655 = vmatprep.subr.mxu0 0.0
    %656 = vmatpush1.msra.mxu0 0.0
    %657 = vmatprep.subr.mxu0 0.0
    %658 = vmatpush1.msra.mxu0 0.0
    %659 = vmatprep.subr.mxu0 0.0
    %660 = vmatpush1.msra.mxu0 0.0
    %661 = vmatprep.subr.mxu0 0.0
    %662 = vmatpush1.msra.mxu0 0.0
    %663 = vmatprep.subr.mxu0 0.0
    %664 = vmatpush1.msra.mxu0 0.0
    %665 = vmatprep.subr.mxu0 0.0
    %666 = vmatpush1.msra.mxu0 0.0
    %667 = vmatprep.subr.mxu0 %v43
    %668 = vmatpush1.msra.mxu0 %v42
    %669 = vmatprep.subr.mxu0 %v41
    %670 = vmatpush1.msra.mxu0 %v40
    %671 = vmatprep.subr.mxu0 %v39
    %672 = vmatpush1.msra.mxu0 %v38
    %673 = vmatprep.subr.mxu0 %v37
    %674 = vmatpush1.msra.mxu0 %v36
    %675 = vmatprep.subr.mxu0 0.0
    %676 = vmatpush2.msra.mxu0 0.0
    %677 = vmatprep.subr.mxu0 0.0
    %678 = vmatpush2.msra.mxu0 0.0
    %679 = vmatprep.subr.mxu0 0.0
    %680 = vmatpush2.msra.mxu0 0.0
    %681 = vmatprep.subr.mxu0 0.0
    %682 = vmatpush2.msra.mxu0 0.0
    %683 = vmatprep.subr.mxu0 0.0
    %684 = vmatpush2.msra.mxu0 0.0
    %685 = vmatprep.subr.mxu0 0.0
    %686 = vmatpush2.msra.mxu0 0.0
    %687 = vmatprep.subr.mxu0 0.0
    %688 = vmatpush2.msra.mxu0 0.0
    %689 = vmatprep.subr.mxu0 0.0
    %690 = vmatpush2.msra.mxu0 0.0
    %691 = vmatprep.subr.mxu0 0.0
    %692 = vmatpush2.msra.mxu0 0.0
    %693 = vmatprep.subr.mxu0 0.0
    %694 = vmatpush2.msra.mxu0 0.0
    %695 = vmatprep.subr.mxu0 0.0
    %696 = vmatpush2.msra.mxu0 0.0
    %697 = vmatprep.subr.mxu0 0.0
    %698 = vmatpush2.msra.mxu0 0.0
    %699 = vmatprep.subr.mxu0 0.0
    %700 = vmatpush2.msra.mxu0 0.0
    %701 = vmatprep.subr.mxu0 0.0
    %702 = vmatpush2.msra.mxu0 0.0
    %703 = vmatprep.subr.mxu0 0.0
    %704 = vmatpush2.msra.mxu0 0.0
    %705 = vmatprep.subr.mxu0 0.0
    %706 = vmatpush2.msra.mxu0 0.0
    %707 = vmatprep.mubr.f32.mxu0 0.0
    %708 = vmatmul.mubr.f32.gmra.mxu0 %v641
    %v709 = vpop.f32.mrf.mxu0
    %v710 = vadd.f32 0.0, %v709
    %v711 = vpop.f32.mrf.mxu0
    %v712 = vadd.f32 0.0, %v711
    %713 = vdwg.mxu0
    %v714 = vadd.f32 %v710, %v523
    %v715 = vadd.f32 %v714, %v64
    %v716 = vxor.u32 %v715, 2147483648
    %v717 = vmul.f32 %v716, 1.442695
    %v718 = vpow.pop %v717
    %v719 = vadd.f32 %v718, 1.0
    %v720 = vrcp.pop %v719
    %v721 = vmul.f32 1.0, %v720
    %v722 = vtanh.pop %v715
    %v723 = vmul.f32 %v721, %v444
    %725 = vrot.lane.b32.xlu0 %v722, 64
    %v726 = vpop.permute.xlu0 %725
    %v728 = vmul.f32 %v721, %v726
    %730 = vrot.lane.b32.xlu0 %v728, 32
    %v731 = vpop.permute.xlu0 %730
    %v733 = vadd.f32 %v723, %v731
    %v734 = vtanh.pop %v733
    %736 = vrot.lane.b32.xlu0 %v734, 64
    %v737 = vpop.permute.xlu0 %736
    %v739 = vmul.f32 %v721, %v737
    %741 = vrot.lane.b32.xlu0 %v739, 32
    %v742 = vpop.permute.xlu0 %741
    %v743 = vsel %vm157, %v742, 0
    %745 = vmatprep.subr.mxu0 0.0
    %746 = vmatpush1.msra.mxu0 0.0
    %747 = vmatprep.subr.mxu0 0.0
    %748 = vmatpush1.msra.mxu0 0.0
    %749 = vmatprep.subr.mxu0 0.0
    %750 = vmatpush1.msra.mxu0 0.0
    %751 = vmatprep.subr.mxu0 0.0
    %752 = vmatpush1.msra.mxu0 0.0
    %753 = vmatprep.subr.mxu0 0.0
    %754 = vmatpush1.msra.mxu0 0.0
    %755 = vmatprep.subr.mxu0 0.0
    %756 = vmatpush1.msra.mxu0 0.0
    %757 = vmatprep.subr.mxu0 0.0
    %758 = vmatpush1.msra.mxu0 0.0
    %759 = vmatprep.subr.mxu0 0.0
    %760 = vmatpush1.msra.mxu0 0.0
    %761 = vmatprep.subr.mxu0 0.0
    %762 = vmatpush1.msra.mxu0 0.0
    %763 = vmatprep.subr.mxu0 0.0
    %764 = vmatpush1.msra.mxu0 0.0
    %765 = vmatprep.subr.mxu0 0.0
    %766 = vmatpush1.msra.mxu0 0.0
    %767 = vmatprep.subr.mxu0 0.0
    %768 = vmatpush1.msra.mxu0 0.0
    %769 = vmatprep.subr.mxu0 %v51
    %770 = vmatpush1.msra.mxu0 %v50
    %771 = vmatprep.subr.mxu0 %v49
    %772 = vmatpush1.msra.mxu0 %v48
    %773 = vmatprep.subr.mxu0 %v47
    %774 = vmatpush1.msra.mxu0 %v46
    %775 = vmatprep.subr.mxu0 %v45
    %776 = vmatpush1.msra.mxu0 %v44
    %777 = vmatprep.subr.mxu0 0.0
    %778 = vmatpush2.msra.mxu0 0.0
    %779 = vmatprep.subr.mxu0 0.0
    %780 = vmatpush2.msra.mxu0 0.0
    %781 = vmatprep.subr.mxu0 0.0
    %782 = vmatpush2.msra.mxu0 0.0
    %783 = vmatprep.subr.mxu0 0.0
    %784 = vmatpush2.msra.mxu0 0.0
    %785 = vmatprep.subr.mxu0 0.0
    %786 = vmatpush2.msra.mxu0 0.0
    %787 = vmatprep.subr.mxu0 0.0
    %788 = vmatpush2.msra.mxu0 0.0
    %789 = vmatprep.subr.mxu0 0.0
    %790 = vmatpush2.msra.mxu0 0.0
    %791 = vmatprep.subr.mxu0 0.0
    %792 = vmatpush2.msra.mxu0 0.0
    %793 = vmatprep.subr.mxu0 0.0
    %794 = vmatpush2.msra.mxu0 0.0
    %795 = vmatprep.subr.mxu0 0.0
    %796 = vmatpush2.msra.mxu0 0.0
    %797 = vmatprep.subr.mxu0 0.0
    %798 = vmatpush2.msra.mxu0 0.0
    %799 = vmatprep.subr.mxu0 0.0
    %800 = vmatpush2.msra.mxu0 0.0
    %801 = vmatprep.subr.mxu0 0.0
    %802 = vmatpush2.msra.mxu0 0.0
    %803 = vmatprep.subr.mxu0 0.0
    %804 = vmatpush2.msra.mxu0 0.0
    %805 = vmatprep.subr.mxu0 0.0
    %806 = vmatpush2.msra.mxu0 0.0
    %807 = vmatprep.subr.mxu0 0.0
    %808 = vmatpush2.msra.mxu0 0.0
    %809 = vmatprep.mubr.f32.mxu0 0.0
    %810 = vmatmul.mubr.f32.gmra.mxu0 %v743
    %v811 = vpop.f32.mrf.mxu0
    %v812 = vadd.f32 0.0, %v811
    %v813 = vpop.f32.mrf.mxu0
    %v814 = vadd.f32 0.0, %v813
    %815 = vdwg.mxu0
    %v816 = vadd.f32 %v814, %v71
    %s817 = scalar_lea.vmem %s9, %s537
    %818 = vst.msk [vmem:[%s817] sm:$0x3] %vm529, %v816
    %v819 = vmul.f32 %v816, 1.442695
    %v820 = vpow.pop %v819
    %v821 = vsel %vm529, %v820, 0.0
    %822 = vadd.xlane.f32.xlu0 %v821
    %v823 = vpop.xlane.xlu0 %822
    %v824 = vrcp.pop %v823
    %s825 = sadd.s32 %s248, 4
    %v827 = vsel %vm157, %v820, 0
    %829 = vmatprep.subr.mxu0 0.0
    %830 = vmatpush1.msra.mxu0 0.0
    %831 = vmatprep.subr.mxu0 0.0
    %832 = vmatpush1.msra.mxu0 0.0
    %833 = vmatprep.subr.mxu0 0.0
    %834 = vmatpush1.msra.mxu0 0.0
    %835 = vmatprep.subr.mxu0 0.0
    %836 = vmatpush1.msra.mxu0 0.0
    %837 = vmatprep.subr.mxu0 0.0
    %838 = vmatpush1.msra.mxu0 0.0
    %839 = vmatprep.subr.mxu0 0.0
    %840 = vmatpush1.msra.mxu0 0.0
    %841 = vmatprep.subr.mxu0 0.0
    %842 = vmatpush1.msra.mxu0 0.0
    %843 = vmatprep.subr.mxu0 0.0
    %844 = vmatpush1.msra.mxu0 0.0
    %845 = vmatprep.subr.mxu0 0.0
    %846 = vmatpush1.msra.mxu0 0.0
    %847 = vmatprep.subr.mxu0 0.0
    %848 = vmatpush1.msra.mxu0 0.0
    %849 = vmatprep.subr.mxu0 0.0
    %850 = vmatpush1.msra.mxu0 0.0
    %851 = vmatprep.subr.mxu0 0.0
    %852 = vmatpush1.msra.mxu0 0.0
    %853 = vmatprep.subr.mxu0 0.0
    %854 = vmatpush1.msra.mxu0 %v35
    %855 = vmatprep.subr.mxu0 0.0
    %856 = vmatpush1.msra.mxu0 %v34
    %857 = vmatprep.subr.mxu0 0.0
    %858 = vmatpush1.msra.mxu0 %v33
    %859 = vmatprep.subr.mxu0 0.0
    %860 = vmatpush1.msra.mxu0 %v32
    %861 = vmatprep.subr.mxu0 0.0
    %862 = vmatpush2.msra.mxu0 0.0
    %863 = vmatprep.subr.mxu0 0.0
    %864 = vmatpush2.msra.mxu0 0.0
    %865 = vmatprep.subr.mxu0 0.0
    %866 = vmatpush2.msra.mxu0 0.0
    %867 = vmatprep.subr.mxu0 0.0
    %868 = vmatpush2.msra.mxu0 0.0
    %869 = vmatprep.subr.mxu0 0.0
    %870 = vmatpush2.msra.mxu0 0.0
    %871 = vmatprep.subr.mxu0 0.0
    %872 = vmatpush2.msra.mxu0 0.0
    %873 = vmatprep.subr.mxu0 0.0
    %874 = vmatpush2.msra.mxu0 0.0
    %875 = vmatprep.subr.mxu0 0.0
    %876 = vmatpush2.msra.mxu0 0.0
    %877 = vmatprep.subr.mxu0 0.0
    %878 = vmatpush2.msra.mxu0 0.0
    %879 = vmatprep.subr.mxu0 0.0
    %880 = vmatpush2.msra.mxu0 0.0
    %881 = vmatprep.subr.mxu0 0.0
    %882 = vmatpush2.msra.mxu0 0.0
    %883 = vmatprep.subr.mxu0 0.0
    %884 = vmatpush2.msra.mxu0 0.0
    %885 = vmatprep.subr.mxu0 0.0
    %886 = vmatpush2.msra.mxu0 0.0
    %887 = vmatprep.subr.mxu0 0.0
    %888 = vmatpush2.msra.mxu0 0.0
    %889 = vmatprep.subr.mxu0 0.0
    %890 = vmatpush2.msra.mxu0 0.0
    %891 = vmatprep.subr.mxu0 0.0
    %892 = vmatpush2.msra.mxu0 0.0
    %893 = vmatprep.mubr.f32.mxu0 0.0
    %894 = vmatmul.mubr.f32.gmra.mxu0 %v827
    %v895 = vpop.f32.mrf.mxu0
    %v896 = vadd.f32 0.0, %v895
    %v897 = vpop.f32.mrf.mxu0
    %898 = vdwg.mxu0
    %v899 = vmul.f32 %v896, %v824
    %v900 = vadd.f32 %v899, %v712
    %v901 = vadd.f32 %v900, %v57
    %v902 = vxor.u32 %v901, 2147483648
    %v903 = vmul.f32 %v902, 1.442695
    %v904 = vpow.pop %v903
    %v905 = vadd.f32 %v904, 1.0
    %v906 = vrcp.pop %v905
    %v907 = vmul.f32 1.0, %v906
    %v908 = vtanh.pop %v901
    %v909 = vmul.f32 %v907, %v631
    %911 = vrot.lane.b32.xlu0 %v908, 64
    %v912 = vpop.permute.xlu0 %911
    %v914 = vmul.f32 %v907, %v912
    %916 = vrot.lane.b32.xlu0 %v914, 32
    %v917 = vpop.permute.xlu0 %916
    %v919 = vadd.f32 %v909, %v917
    %v920 = vtanh.pop %v919
    %922 = vrot.lane.b32.xlu0 %v920, 64
    %v923 = vpop.permute.xlu0 %922
    %v925 = vmul.f32 %v907, %v923
    %927 = vrot.lane.b32.xlu0 %v925, 32
    %v928 = vpop.permute.xlu0 %927
    %v929 = vsel %vm157, %v928, 0
    %931 = vmatprep.subr.mxu0 0.0
    %932 = vmatpush1.msra.mxu0 0.0
    %933 = vmatprep.subr.mxu0 0.0
    %934 = vmatpush1.msra.mxu0 0.0
    %935 = vmatprep.subr.mxu0 0.0
    %936 = vmatpush1.msra.mxu0 0.0
    %937 = vmatprep.subr.mxu0 0.0
    %938 = vmatpush1.msra.mxu0 0.0
    %939 = vmatprep.subr.mxu0 0.0
    %940 = vmatpush1.msra.mxu0 0.0
    %941 = vmatprep.subr.mxu0 0.0
    %942 = vmatpush1.msra.mxu0 0.0
    %943 = vmatprep.subr.mxu0 0.0
    %944 = vmatpush1.msra.mxu0 0.0
    %945 = vmatprep.subr.mxu0 0.0
    %946 = vmatpush1.msra.mxu0 0.0
    %947 = vmatprep.subr.mxu0 0.0
    %948 = vmatpush1.msra.mxu0 0.0
    %949 = vmatprep.subr.mxu0 0.0
    %950 = vmatpush1.msra.mxu0 0.0
    %951 = vmatprep.subr.mxu0 0.0
    %952 = vmatpush1.msra.mxu0 0.0
    %953 = vmatprep.subr.mxu0 0.0
    %954 = vmatpush1.msra.mxu0 0.0
    %955 = vmatprep.subr.mxu0 %v43
    %956 = vmatpush1.msra.mxu0 %v42
    %957 = vmatprep.subr.mxu0 %v41
    %958 = vmatpush1.msra.mxu0 %v40
    %959 = vmatprep.subr.mxu0 %v39
    %960 = vmatpush1.msra.mxu0 %v38
    %961 = vmatprep.subr.mxu0 %v37
    %962 = vmatpush1.msra.mxu0 %v36
    %963 = vmatprep.subr.mxu0 0.0
    %964 = vmatpush2.msra.mxu0 0.0
    %965 = vmatprep.subr.mxu0 0.0
    %966 = vmatpush2.msra.mxu0 0.0
    %967 = vmatprep.subr.mxu0 0.0
    %968 = vmatpush2.msra.mxu0 0.0
    %969 = vmatprep.subr.mxu0 0.0
    %970 = vmatpush2.msra.mxu0 0.0
    %971 = vmatprep.subr.mxu0 0.0
    %972 = vmatpush2.msra.mxu0 0.0
    %973 = vmatprep.subr.mxu0 0.0
    %974 = vmatpush2.msra.mxu0 0.0
    %975 = vmatprep.subr.mxu0 0.0
    %976 = vmatpush2.msra.mxu0 0.0
    %977 = vmatprep.subr.mxu0 0.0
    %978 = vmatpush2.msra.mxu0 0.0
    %979 = vmatprep.subr.mxu0 0.0
    %980 = vmatpush2.msra.mxu0 0.0
    %981 = vmatprep.subr.mxu0 0.0
    %982 = vmatpush2.msra.mxu0 0.0
    %983 = vmatprep.subr.mxu0 0.0
    %984 = vmatpush2.msra.mxu0 0.0
    %985 = vmatprep.subr.mxu0 0.0
    %986 = vmatpush2.msra.mxu0 0.0
    %987 = vmatprep.subr.mxu0 0.0
    %988 = vmatpush2.msra.mxu0 0.0
    %989 = vmatprep.subr.mxu0 0.0
    %990 = vmatpush2.msra.mxu0 0.0
    %991 = vmatprep.subr.mxu0 0.0
    %992 = vmatpush2.msra.mxu0 0.0
    %993 = vmatprep.subr.mxu0 0.0
    %994 = vmatpush2.msra.mxu0 0.0
    %995 = vmatprep.mubr.f32.mxu0 0.0
    %996 = vmatmul.mubr.f32.gmra.mxu0 %v929
    %v997 = vpop.f32.mrf.mxu0
    %v998 = vadd.f32 0.0, %v997
    %v999 = vpop.f32.mrf.mxu0
    %v1000 = vadd.f32 0.0, %v999
    %1001 = vdwg.mxu0
    %v1002 = vadd.f32 %v998, %v812
    %v1003 = vadd.f32 %v1002, %v64
    %v1004 = vxor.u32 %v1003, 2147483648
    %v1005 = vmul.f32 %v1004, 1.442695
    %v1006 = vpow.pop %v1005
    %v1007 = vadd.f32 %v1006, 1.0
    %v1008 = vrcp.pop %v1007
    %v1009 = vmul.f32 1.0, %v1008
    %v1010 = vtanh.pop %v1003
    %v1011 = vmul.f32 %v1009, %v733
    %1013 = vrot.lane.b32.xlu0 %v1010, 64
    %v1014 = vpop.permute.xlu0 %1013
    %v1016 = vmul.f32 %v1009, %v1014
    %1018 = vrot.lane.b32.xlu0 %v1016, 32
    %v1019 = vpop.permute.xlu0 %1018
    %v1021 = vadd.f32 %v1011, %v1019
    %v1022 = vtanh.pop %v1021
    %1024 = vrot.lane.b32.xlu0 %v1022, 64
    %v1025 = vpop.permute.xlu0 %1024
    %v1027 = vmul.f32 %v1009, %v1025
    %1029 = vrot.lane.b32.xlu0 %v1027, 32
    %v1030 = vpop.permute.xlu0 %1029
    %v1031 = vsel %vm157, %v1030, 0
    %1033 = vmatprep.subr.mxu0 0.0
    %1034 = vmatpush1.msra.mxu0 0.0
    %1035 = vmatprep.subr.mxu0 0.0
    %1036 = vmatpush1.msra.mxu0 0.0
    %1037 = vmatprep.subr.mxu0 0.0
    %1038 = vmatpush1.msra.mxu0 0.0
    %1039 = vmatprep.subr.mxu0 0.0
    %1040 = vmatpush1.msra.mxu0 0.0
    %1041 = vmatprep.subr.mxu0 0.0
    %1042 = vmatpush1.msra.mxu0 0.0
    %1043 = vmatprep.subr.mxu0 0.0
    %1044 = vmatpush1.msra.mxu0 0.0
    %1045 = vmatprep.subr.mxu0 0.0
    %1046 = vmatpush1.msra.mxu0 0.0
    %1047 = vmatprep.subr.mxu0 0.0
    %1048 = vmatpush1.msra.mxu0 0.0
    %1049 = vmatprep.subr.mxu0 0.0
    %1050 = vmatpush1.msra.mxu0 0.0
    %1051 = vmatprep.subr.mxu0 0.0
    %1052 = vmatpush1.msra.mxu0 0.0
    %1053 = vmatprep.subr.mxu0 0.0
    %1054 = vmatpush1.msra.mxu0 0.0
    %1055 = vmatprep.subr.mxu0 0.0
    %1056 = vmatpush1.msra.mxu0 0.0
    %1057 = vmatprep.subr.mxu0 %v51
    %1058 = vmatpush1.msra.mxu0 %v50
    %1059 = vmatprep.subr.mxu0 %v49
    %1060 = vmatpush1.msra.mxu0 %v48
    %1061 = vmatprep.subr.mxu0 %v47
    %1062 = vmatpush1.msra.mxu0 %v46
    %1063 = vmatprep.subr.mxu0 %v45
    %1064 = vmatpush1.msra.mxu0 %v44
    %1065 = vmatprep.subr.mxu0 0.0
    %1066 = vmatpush2.msra.mxu0 0.0
    %1067 = vmatprep.subr.mxu0 0.0
    %1068 = vmatpush2.msra.mxu0 0.0
    %1069 = vmatprep.subr.mxu0 0.0
    %1070 = vmatpush2.msra.mxu0 0.0
    %1071 = vmatprep.subr.mxu0 0.0
    %1072 = vmatpush2.msra.mxu0 0.0
    %1073 = vmatprep.subr.mxu0 0.0
    %1074 = vmatpush2.msra.mxu0 0.0
    %1075 = vmatprep.subr.mxu0 0.0
    %1076 = vmatpush2.msra.mxu0 0.0
    %1077 = vmatprep.subr.mxu0 0.0
    %1078 = vmatpush2.msra.mxu0 0.0
    %1079 = vmatprep.subr.mxu0 0.0
    %1080 = vmatpush2.msra.mxu0 0.0
    %1081 = vmatprep.subr.mxu0 0.0
    %1082 = vmatpush2.msra.mxu0 0.0
    %1083 = vmatprep.subr.mxu0 0.0
    %1084 = vmatpush2.msra.mxu0 0.0
    %1085 = vmatprep.subr.mxu0 0.0
    %1086 = vmatpush2.msra.mxu0 0.0
    %1087 = vmatprep.subr.mxu0 0.0
    %1088 = vmatpush2.msra.mxu0 0.0
    %1089 = vmatprep.subr.mxu0 0.0
    %1090 = vmatpush2.msra.mxu0 0.0
    %1091 = vmatprep.subr.mxu0 0.0
    %1092 = vmatpush2.msra.mxu0 0.0
    %1093 = vmatprep.subr.mxu0 0.0
    %1094 = vmatpush2.msra.mxu0 0.0
    %1095 = vmatprep.subr.mxu0 0.0
    %1096 = vmatpush2.msra.mxu0 0.0
    %1097 = vmatprep.mubr.f32.mxu0 0.0
    %1098 = vmatmul.mubr.f32.gmra.mxu0 %v1031
    %v1099 = vpop.f32.mrf.mxu0
    %v1100 = vadd.f32 0.0, %v1099
    %v1101 = vpop.f32.mrf.mxu0
    %v1102 = vadd.f32 0.0, %v1101
    %1103 = vdwg.mxu0
    %v1104 = vadd.f32 %v1102, %v71
    %s1105 = scalar_lea.vmem %s9, %s825
    %1106 = vst.msk [vmem:[%s1105] sm:$0x3] %vm529, %v1104
    %v1107 = vmul.f32 %v1104, 1.442695
    %v1108 = vpow.pop %v1107
    %v1109 = vsel %vm529, %v1108, 0.0
    %1110 = vadd.xlane.f32.xlu0 %v1109
    %v1111 = vpop.xlane.xlu0 %1110
    %v1112 = vrcp.pop %v1111
    %s1113 = sadd.s32 %s248, 6
    %v1115 = vsel %vm157, %v1108, 0
    %1117 = vmatprep.subr.mxu0 0.0
    %1118 = vmatpush1.msra.mxu0 0.0
    %1119 = vmatprep.subr.mxu0 0.0
    %1120 = vmatpush1.msra.mxu0 0.0
    %1121 = vmatprep.subr.mxu0 0.0
    %1122 = vmatpush1.msra.mxu0 0.0
    %1123 = vmatprep.subr.mxu0 0.0
    %1124 = vmatpush1.msra.mxu0 0.0
    %1125 = vmatprep.subr.mxu0 0.0
    %1126 = vmatpush1.msra.mxu0 0.0
    %1127 = vmatprep.subr.mxu0 0.0
    %1128 = vmatpush1.msra.mxu0 0.0
    %1129 = vmatprep.subr.mxu0 0.0
    %1130 = vmatpush1.msra.mxu0 0.0
    %1131 = vmatprep.subr.mxu0 0.0
    %1132 = vmatpush1.msra.mxu0 0.0
    %1133 = vmatprep.subr.mxu0 0.0
    %1134 = vmatpush1.msra.mxu0 0.0
    %1135 = vmatprep.subr.mxu0 0.0
    %1136 = vmatpush1.msra.mxu0 0.0
    %1137 = vmatprep.subr.mxu0 0.0
    %1138 = vmatpush1.msra.mxu0 0.0
    %1139 = vmatprep.subr.mxu0 0.0
    %1140 = vmatpush1.msra.mxu0 0.0
    %1141 = vmatprep.subr.mxu0 0.0
    %1142 = vmatpush1.msra.mxu0 %v35
    %1143 = vmatprep.subr.mxu0 0.0
    %1144 = vmatpush1.msra.mxu0 %v34
    %1145 = vmatprep.subr.mxu0 0.0
    %1146 = vmatpush1.msra.mxu0 %v33
    %1147 = vmatprep.subr.mxu0 0.0
    %1148 = vmatpush1.msra.mxu0 %v32
    %1149 = vmatprep.subr.mxu0 0.0
    %1150 = vmatpush2.msra.mxu0 0.0
    %1151 = vmatprep.subr.mxu0 0.0
    %1152 = vmatpush2.msra.mxu0 0.0
    %1153 = vmatprep.subr.mxu0 0.0
    %1154 = vmatpush2.msra.mxu0 0.0
    %1155 = vmatprep.subr.mxu0 0.0
    %1156 = vmatpush2.msra.mxu0 0.0
    %1157 = vmatprep.subr.mxu0 0.0
    %1158 = vmatpush2.msra.mxu0 0.0
    %1159 = vmatprep.subr.mxu0 0.0
    %1160 = vmatpush2.msra.mxu0 0.0
    %1161 = vmatprep.subr.mxu0 0.0
    %1162 = vmatpush2.msra.mxu0 0.0
    %1163 = vmatprep.subr.mxu0 0.0
    %1164 = vmatpush2.msra.mxu0 0.0
    %1165 = vmatprep.subr.mxu0 0.0
    %1166 = vmatpush2.msra.mxu0 0.0
    %1167 = vmatprep.subr.mxu0 0.0
    %1168 = vmatpush2.msra.mxu0 0.0
    %1169 = vmatprep.subr.mxu0 0.0
    %1170 = vmatpush2.msra.mxu0 0.0
    %1171 = vmatprep.subr.mxu0 0.0
    %1172 = vmatpush2.msra.mxu0 0.0
    %1173 = vmatprep.subr.mxu0 0.0
    %1174 = vmatpush2.msra.mxu0 0.0
    %1175 = vmatprep.subr.mxu0 0.0
    %1176 = vmatpush2.msra.mxu0 0.0
    %1177 = vmatprep.subr.mxu0 0.0
    %1178 = vmatpush2.msra.mxu0 0.0
    %1179 = vmatprep.subr.mxu0 0.0
    %1180 = vmatpush2.msra.mxu0 0.0
    %1181 = vmatprep.mubr.f32.mxu0 0.0
    %1182 = vmatmul.mubr.f32.gmra.mxu0 %v1115
    %v1183 = vpop.f32.mrf.mxu0
    %v1184 = vadd.f32 0.0, %v1183
    %v1185 = vpop.f32.mrf.mxu0
    %1186 = vdwg.mxu0
    %v1187 = vmul.f32 %v1184, %v1112
    %v1188 = vadd.f32 %v1187, %v1000
    %v1189 = vadd.f32 %v1188, %v57
    %v1190 = vxor.u32 %v1189, 2147483648
    %v1191 = vmul.f32 %v1190, 1.442695
    %v1192 = vpow.pop %v1191
    %v1193 = vadd.f32 %v1192, 1.0
    %v1194 = vrcp.pop %v1193
    %v1195 = vmul.f32 1.0, %v1194
    %v1196 = vtanh.pop %v1189
    %v1197 = vmul.f32 %v1195, %v919
    %1199 = vrot.lane.b32.xlu0 %v1196, 64
    %v1200 = vpop.permute.xlu0 %1199
    %v1202 = vmul.f32 %v1195, %v1200
    %1204 = vrot.lane.b32.xlu0 %v1202, 32
    %v1205 = vpop.permute.xlu0 %1204
    %v1207 = vadd.f32 %v1197, %v1205
    %v1208 = vtanh.pop %v1207
    %1210 = vrot.lane.b32.xlu0 %v1208, 64
    %v1211 = vpop.permute.xlu0 %1210
    %v1213 = vmul.f32 %v1195, %v1211
    %1215 = vrot.lane.b32.xlu0 %v1213, 32
    %v1216 = vpop.permute.xlu0 %1215
    %v1217 = vsel %vm157, %v1216, 0
    %1219 = vmatprep.subr.mxu0 0.0
    %1220 = vmatpush1.msra.mxu0 0.0
    %1221 = vmatprep.subr.mxu0 0.0
    %1222 = vmatpush1.msra.mxu0 0.0
    %1223 = vmatprep.subr.mxu0 0.0
    %1224 = vmatpush1.msra.mxu0 0.0
    %1225 = vmatprep.subr.mxu0 0.0
    %1226 = vmatpush1.msra.mxu0 0.0
    %1227 = vmatprep.subr.mxu0 0.0
    %1228 = vmatpush1.msra.mxu0 0.0
    %1229 = vmatprep.subr.mxu0 0.0
    %1230 = vmatpush1.msra.mxu0 0.0
    %1231 = vmatprep.subr.mxu0 0.0
    %1232 = vmatpush1.msra.mxu0 0.0
    %1233 = vmatprep.subr.mxu0 0.0
    %1234 = vmatpush1.msra.mxu0 0.0
    %1235 = vmatprep.subr.mxu0 0.0
    %1236 = vmatpush1.msra.mxu0 0.0
    %1237 = vmatprep.subr.mxu0 0.0
    %1238 = vmatpush1.msra.mxu0 0.0
    %1239 = vmatprep.subr.mxu0 0.0
    %1240 = vmatpush1.msra.mxu0 0.0
    %1241 = vmatprep.subr.mxu0 0.0
    %1242 = vmatpush1.msra.mxu0 0.0
    %1243 = vmatprep.subr.mxu0 %v43
    %1244 = vmatpush1.msra.mxu0 %v42
    %1245 = vmatprep.subr.mxu0 %v41
    %1246 = vmatpush1.msra.mxu0 %v40
    %1247 = vmatprep.subr.mxu0 %v39
    %1248 = vmatpush1.msra.mxu0 %v38
    %1249 = vmatprep.subr.mxu0 %v37
    %1250 = vmatpush1.msra.mxu0 %v36
    %1251 = vmatprep.subr.mxu0 0.0
    %1252 = vmatpush2.msra.mxu0 0.0
    %1253 = vmatprep.subr.mxu0 0.0
    %1254 = vmatpush2.msra.mxu0 0.0
    %1255 = vmatprep.subr.mxu0 0.0
    %1256 = vmatpush2.msra.mxu0 0.0
    %1257 = vmatprep.subr.mxu0 0.0
    %1258 = vmatpush2.msra.mxu0 0.0
    %1259 = vmatprep.subr.mxu0 0.0
    %1260 = vmatpush2.msra.mxu0 0.0
    %1261 = vmatprep.subr.mxu0 0.0
    %1262 = vmatpush2.msra.mxu0 0.0
    %1263 = vmatprep.subr.mxu0 0.0
    %1264 = vmatpush2.msra.mxu0 0.0
    %1265 = vmatprep.subr.mxu0 0.0
    %1266 = vmatpush2.msra.mxu0 0.0
    %1267 = vmatprep.subr.mxu0 0.0
    %1268 = vmatpush2.msra.mxu0 0.0
    %1269 = vmatprep.subr.mxu0 0.0
    %1270 = vmatpush2.msra.mxu0 0.0
    %1271 = vmatprep.subr.mxu0 0.0
    %1272 = vmatpush2.msra.mxu0 0.0
    %1273 = vmatprep.subr.mxu0 0.0
    %1274 = vmatpush2.msra.mxu0 0.0
    %1275 = vmatprep.subr.mxu0 0.0
    %1276 = vmatpush2.msra.mxu0 0.0
    %1277 = vmatprep.subr.mxu0 0.0
    %1278 = vmatpush2.msra.mxu0 0.0
    %1279 = vmatprep.subr.mxu0 0.0
    %1280 = vmatpush2.msra.mxu0 0.0
    %1281 = vmatprep.subr.mxu0 0.0
    %1282 = vmatpush2.msra.mxu0 0.0
    %1283 = vmatprep.mubr.f32.mxu0 0.0
    %1284 = vmatmul.mubr.f32.gmra.mxu0 %v1217
    %v1285 = vpop.f32.mrf.mxu0
    %v1286 = vadd.f32 0.0, %v1285
    %v1287 = vpop.f32.mrf.mxu0
    %v1288 = vadd.f32 0.0, %v1287
    %1289 = vdwg.mxu0
    %v1290 = vadd.f32 %v1286, %v1100
    %v1291 = vadd.f32 %v1290, %v64
    %v1292 = vxor.u32 %v1291, 2147483648
    %v1293 = vmul.f32 %v1292, 1.442695
    %v1294 = vpow.pop %v1293
    %v1295 = vadd.f32 %v1294, 1.0
    %v1296 = vrcp.pop %v1295
    %v1297 = vmul.f32 1.0, %v1296
    %v1298 = vtanh.pop %v1291
    %v1299 = vmul.f32 %v1297, %v1021
    %1301 = vrot.lane.b32.xlu0 %v1298, 64
    %v1302 = vpop.permute.xlu0 %1301
    %v1304 = vmul.f32 %v1297, %v1302
    %1306 = vrot.lane.b32.xlu0 %v1304, 32
    %v1307 = vpop.permute.xlu0 %1306
    %v1309 = vadd.f32 %v1299, %v1307
    %v1310 = vtanh.pop %v1309
    %1312 = vrot.lane.b32.xlu0 %v1310, 64
    %v1313 = vpop.permute.xlu0 %1312
    %v1315 = vmul.f32 %v1297, %v1313
    %1317 = vrot.lane.b32.xlu0 %v1315, 32
    %v1318 = vpop.permute.xlu0 %1317
    %v1319 = vsel %vm157, %v1318, 0
    %1321 = vmatprep.subr.mxu0 0.0
    %1322 = vmatpush1.msra.mxu0 0.0
    %1323 = vmatprep.subr.mxu0 0.0
    %1324 = vmatpush1.msra.mxu0 0.0
    %1325 = vmatprep.subr.mxu0 0.0
    %1326 = vmatpush1.msra.mxu0 0.0
    %1327 = vmatprep.subr.mxu0 0.0
    %1328 = vmatpush1.msra.mxu0 0.0
    %1329 = vmatprep.subr.mxu0 0.0
    %1330 = vmatpush1.msra.mxu0 0.0
    %1331 = vmatprep.subr.mxu0 0.0
    %1332 = vmatpush1.msra.mxu0 0.0
    %1333 = vmatprep.subr.mxu0 0.0
    %1334 = vmatpush1.msra.mxu0 0.0
    %1335 = vmatprep.subr.mxu0 0.0
    %1336 = vmatpush1.msra.mxu0 0.0
    %1337 = vmatprep.subr.mxu0 0.0
    %1338 = vmatpush1.msra.mxu0 0.0
    %1339 = vmatprep.subr.mxu0 0.0
    %1340 = vmatpush1.msra.mxu0 0.0
    %1341 = vmatprep.subr.mxu0 0.0
    %1342 = vmatpush1.msra.mxu0 0.0
    %1343 = vmatprep.subr.mxu0 0.0
    %1344 = vmatpush1.msra.mxu0 0.0
    %1345 = vmatprep.subr.mxu0 %v51
    %1346 = vmatpush1.msra.mxu0 %v50
    %1347 = vmatprep.subr.mxu0 %v49
    %1348 = vmatpush1.msra.mxu0 %v48
    %1349 = vmatprep.subr.mxu0 %v47
    %1350 = vmatpush1.msra.mxu0 %v46
    %1351 = vmatprep.subr.mxu0 %v45
    %1352 = vmatpush1.msra.mxu0 %v44
    %1353 = vmatprep.subr.mxu0 0.0
    %1354 = vmatpush2.msra.mxu0 0.0
    %1355 = vmatprep.subr.mxu0 0.0
    %1356 = vmatpush2.msra.mxu0 0.0
    %1357 = vmatprep.subr.mxu0 0.0
    %1358 = vmatpush2.msra.mxu0 0.0
    %1359 = vmatprep.subr.mxu0 0.0
    %1360 = vmatpush2.msra.mxu0 0.0
    %1361 = vmatprep.subr.mxu0 0.0
    %1362 = vmatpush2.msra.mxu0 0.0
    %1363 = vmatprep.subr.mxu0 0.0
    %1364 = vmatpush2.msra.mxu0 0.0
    %1365 = vmatprep.subr.mxu0 0.0
    %1366 = vmatpush2.msra.mxu0 0.0
    %1367 = vmatprep.subr.mxu0 0.0
    %1368 = vmatpush2.msra.mxu0 0.0
    %1369 = vmatprep.subr.mxu0 0.0
    %1370 = vmatpush2.msra.mxu0 0.0
    %1371 = vmatprep.subr.mxu0 0.0
    %1372 = vmatpush2.msra.mxu0 0.0
    %1373 = vmatprep.subr.mxu0 0.0
    %1374 = vmatpush2.msra.mxu0 0.0
    %1375 = vmatprep.subr.mxu0 0.0
    %1376 = vmatpush2.msra.mxu0 0.0
    %1377 = vmatprep.subr.mxu0 0.0
    %1378 = vmatpush2.msra.mxu0 0.0
    %1379 = vmatprep.subr.mxu0 0.0
    %1380 = vmatpush2.msra.mxu0 0.0
    %1381 = vmatprep.subr.mxu0 0.0
    %1382 = vmatpush2.msra.mxu0 0.0
    %1383 = vmatprep.subr.mxu0 0.0
    %1384 = vmatpush2.msra.mxu0 0.0
    %1385 = vmatprep.mubr.f32.mxu0 0.0
    %1386 = vmatmul.mubr.f32.gmra.mxu0 %v1319
    %v1387 = vpop.f32.mrf.mxu0
    %v1388 = vadd.f32 0.0, %v1387
    %v1389 = vpop.f32.mrf.mxu0
    %v1390 = vadd.f32 0.0, %v1389
    %1391 = vdwg.mxu0
    %v1392 = vadd.f32 %v1390, %v71
    %s1393 = scalar_lea.vmem %s9, %s1113
    %1394 = vst.msk [vmem:[%s1393] sm:$0x3] %vm529, %v1392
    %v1395 = vmul.f32 %v1392, 1.442695
    %v1396 = vpow.pop %v1395
    %v1397 = vsel %vm529, %v1396, 0.0
    %1398 = vadd.xlane.f32.xlu0 %v1397
    %v1399 = vpop.xlane.xlu0 %1398
    %v1400 = vrcp.pop %v1399
  $region42: #{lstm_decoder_forward.1} parent=0 // loop_footer
    %s241 = sadd.s32 1, %s237
  $region43: #{lstm_decoder_forward.1} parent=0 // loop_footer_branch
    %236 = sbr.rel target = $region39
  $region44: #{lstm_decoder_forward.1} parent=0 // loop_exit
    _
  // Predicated region
  $region45: #{lstm_decoder_forward.1} parent=0 // pred_check
    _
  $region46: #{lstm_decoder_forward.1} parent=0 // pred_check_branch
    %1402 = sbr.rel (0) target = $region48
  $region47: #{lstm_decoder_forward.1} parent=0 // pred_region
    _
  $region48: #{lstm_decoder_forward.1} parent=0 // pred_fallthru
    _
  // Predicated region
  $region49: #{lstm_decoder_forward.1} parent=0 // pred_check
    _
  $region50: #{lstm_decoder_forward.1} parent=0 // pred_check_branch
    %1404 = sbr.rel (0) target = $region52
  $region51: #{lstm_decoder_forward.1} parent=0 // pred_region
    _
  $region52: #{lstm_decoder_forward.1} parent=0 // pred_fallthru
    _

</llo_original>
